<compile_context>
chip_gen: v7x
topology: tpu7x:2x2x1
jax: 0.10.0
libtpu: 0.0.40
codegen_flags: <defaults>
</compile_context>

<pallas_src>
import jax
import jax.numpy as jnp
from jax.experimental import pallas as pl
from jax.experimental.pallas import tpu as pltpu


# -----------------------------------------------------------------------------
# Generation-aware VMEM budgeting
# -----------------------------------------------------------------------------
def _vmem_capacity_bytes():
    """Physical VMEM per core; conservative (v7x-sized) fallback if unknown."""
    try:
        cap = getattr(pltpu.get_tpu_info(), "vmem_capacity_bytes", None)
        if cap:
            return int(cap)
    except Exception:
        # Hardware-info query only (no semantic fallback): assume the smallest
        # VMEM of the supported generations (v7x, 64 MiB).
        pass
    return 64 * 1024 * 1024


def _step_footprint_bytes(C1, C2, k, W, Hs, hp):
    """Approximate per-grid-step VMEM footprint."""
    HsW, hpW = Hs * W, hp * W
    L = HsW + 2 * hpW
    f32, bf16 = 4, 2
    # double-buffered streamed blocks (main strip + 2 halos in, strip out)
    io = 2 * ((HsW + 2 * hpW) * C1 * f32 + HsW * C2 * f32)
    # resident params / masks (x2: conservative double-buffer accounting)
    params = 2 * (C2 * C1 * bf16 + 2 * C2 * f32 + C2 * k * k * f32 + k * HsW * f32)
    # persistent y scratch + in-kernel temporaries (per-dy window, acc, taps)
    scratch = C2 * L * f32
    temps = 4 * C2 * HsW * f32
    return io + params + scratch + temps


def _choose_strips(N, H, W, C1, C2, k, p, max_rows_per_strip, vmem_budget_bytes):
    """Pick (Hs, hp): strip rows and halo rows.

    Constraints: hp > p (all depthwise tap windows are statically in-range),
    hp | H, (hp*W) % 128 == 0 (lane-aligned halo blocks), Hs a multiple of hp
    dividing H.  Falls back to one full-image strip if no decomposition exists.
    Prefers the largest Hs that fits the VMEM budget (big r = Hs/hp caps the
    halo over-read and amortizes per-step overhead), then backs off only if the
    grid would otherwise be too small to feed v7x's 2 TensorCores.
    """
    hp = None
    for h in range(p + 1, H + 1):
        if H % h == 0 and (h * W) % 128 == 0:
            hp = h
            break
    if hp is None:
        return H, H                                   # single full-image strip
    if max_rows_per_strip is None:
        max_rows_per_strip = H
    cands = [m for m in range(hp, H + 1, hp)
             if H % m == 0 and m <= max(max_rows_per_strip, hp)]
    fit = [m for m in cands
           if _step_footprint_bytes(C1, C2, k, W, m, hp) <= vmem_budget_bytes]
    pool = fit if fit else [min(cands)]
    Hs = max(pool)
    # v7x megacore: keep >= 4 grid steps when possible (and still lane-dense).
    if N * (H // Hs) < 4:
        better = [m for m in pool if N * (H // m) >= 4 and m * W >= 512]
        if better:
            Hs = max(better)
    return Hs, hp


# -----------------------------------------------------------------------------
# Kernel
# -----------------------------------------------------------------------------
def _build_lightconv_kernel(*, C2, W, k, p, Hs, hp, S):
    HsW = Hs * W
    hpW = hp * W
    L = HsW + 2 * hpW        # padded strip: [hp halo rows | Hs rows | hp halo rows]

    def kernel(x_top_ref, x_main_ref, x_bot_ref,
               w1_ref, b1_ref, wdw_ref, b2_ref, mask_ref, o_ref, y_ref):
        s = pl.program_id(1)
        w1 = w1_ref[...]                                  # (C2, C1) bf16, BN1 folded
        b1 = b1_ref[...]                                  # (C2, 1)  f32

        def conv1_into(start, x_block):
            # 1x1 conv on the MXU (bf16 in, f32 accumulate) + BN1 bias.
            xb = x_block.astype(w1.dtype)
            y_ref[:, start:start + x_block.shape[-1]] = (
                jnp.dot(w1, xb, preferred_element_type=jnp.float32) + b1)

        # ---- conv1 into the persistent y scratch ----------------------------
        conv1_into(hpW, x_main_ref[0])                    # main strip

        @pl.when(s == 0)                                  # top of image: zero halo
        def _():
            y_ref[:, 0:hpW] = jnp.zeros((C2, hpW), jnp.float32)

        @pl.when(s > 0)                                   # interior: compute halo
        def _():
            conv1_into(0, x_top_ref[0])

        @pl.when(s == S - 1)                              # bottom of image: zero halo
        def _():
            y_ref[:, hpW + HsW:L] = jnp.zeros((C2, hpW), jnp.float32)

        @pl.when(s < S - 1)
        def _():
            conv1_into(hpW + HsW, x_bot_ref[0])

        # ---- conv2: depthwise kxk (BN2 scale folded into wdw) ---------------
        # Per dy: one lane-aligned window load from the scratch, then k small
        # statically-offset value slices (dx taps), masked only at the
        # left/right image borders, FMA-accumulated on the VPU.
        w_all = wdw_ref[...]                              # (C2, k*k)
        m_all = mask_ref[...]                             # (k, HsW) column masks
        acc = None
        for dy in range(k):
            row_off = (hp - p + dy) * W
            lo = row_off - p
            hi = row_off + p + HsW
            a0 = (lo // 128) * 128
            a1 = min(-(-hi // 128) * 128, L)
            win = y_ref[:, a0:a1]                         # lane-aligned ref load
            for dx in range(k):
                st = row_off + (dx - p) - a0
                tap = win[:, st:st + HsW]
                if dx != p:
                    tap = tap * m_all[dx:dx + 1, :]
                t = dy * k + dx
                contrib = tap * w_all[:, t:t + 1]
                acc = contrib if acc is None else acc + contrib

        out = jnp.maximum(acc + b2_ref[...], 0.0)         # BN2 bias + ReLU
        o_ref[0] = out.astype(o_ref.dtype)

    return kernel


# -----------------------------------------------------------------------------
# Wrapper
# -----------------------------------------------------------------------------
def lightconv_pallas(x_nchw, params, *, max_rows_per_strip=None,
                     conv1_dtype=jnp.bfloat16):
    """LightConv forward: (N, C1, H, W) f32 -> (N, C2, H, W) f32 (eval-mode BN)."""
    w1, s1, b1, wdw, s2, b2 = params
    N, C1, H, W = x_nchw.shape
    C2 = w1.shape[1]
    k = wdw.shape[0]
    if k % 2 != 1:
        raise ValueError("LightConv depthwise kernel size must be odd for SAME padding")
    p = k // 2
    if H <= p or W * max(H - p, 1) < max(p, 1):
        raise ValueError("spatial dims too small for this kernel")

    # ---- fold BN scales into the conv weights on the host --------------------
    w1_f = jnp.transpose(w1 * s1, (1, 0)).astype(conv1_dtype)        # (C2, C1)
    b1_col = jnp.reshape(b1, (C2, 1)).astype(jnp.float32)
    wdw_k = jnp.transpose((wdw * s2.reshape(1, 1, C2)).reshape(k * k, C2),
                          (1, 0)).astype(jnp.float32)                # (C2, k*k)
    b2_col = jnp.reshape(b2, (C2, 1)).astype(jnp.float32)

    # ---- generation-aware strip sizing / VMEM limit ---------------------------
    cap = _vmem_capacity_bytes()
    budget = int(0.45 * cap)
    Hs, hp = _choose_strips(N, H, W, C1, C2, k, p, max_rows_per_strip, budget)
    if (hp - p) * W < p:
        raise ValueError("image too small for the chosen halo decomposition")
    S = H // Hs
    HsW, hpW = Hs * W, hp * W
    r = Hs // hp
    n_halo_blocks = (H * W) // hpW
    L = HsW + 2 * hpW

    footprint = _step_footprint_bytes(C1, C2, k, W, Hs, hp)
    vmem_limit = int(min(0.9 * cap, max(32 * 1024 * 1024, 1.5 * footprint)))

    # depthwise column-validity masks (left/right image borders), host precomputed
    col = jnp.arange(HsW, dtype=jnp.int32) % W
    colmask = jnp.stack(
        [((col + (dx - p) >= 0) & (col + (dx - p) < W)).astype(jnp.float32)
         for dx in range(k)], axis=0)                                # (k, HsW)

    # NCHW kept as-is; only a free reshape flattening (H, W) onto the lane axis
    x_flat = x_nchw.reshape(N, C1, H * W)

    kernel = _build_lightconv_kernel(C2=C2, W=W, k=k, p=p, Hs=Hs, hp=hp, S=S)

    out_flat = pl.pallas_call(
        kernel,
        out_shape=jax.ShapeDtypeStruct((N, C2, H * W), jnp.float32),
        grid_spec=pltpu.PrefetchScalarGridSpec(
            num_scalar_prefetch=0,
            grid=(N, S),
            in_specs=[
                # top halo rows (clamped at the image top; zeroed in-kernel)
                pl.BlockSpec((1, C1, hpW),
                             lambda n, s: (n, 0, jnp.maximum(s * r - 1, 0))),
                # main strip rows
                pl.BlockSpec((1, C1, HsW), lambda n, s: (n, 0, s)),
                # bottom halo rows (clamped at the image bottom; zeroed in-kernel)
                pl.BlockSpec((1, C1, hpW),
                             lambda n, s: (n, 0, jnp.minimum((s + 1) * r,
                                                             n_halo_blocks - 1))),
                # grid-invariant params/masks: constant index maps -> single
                # resident copy across the whole grid.
                pl.BlockSpec((C2, C1), lambda n, s: (0, 0)),
                pl.BlockSpec((C2, 1), lambda n, s: (0, 0)),
                pl.BlockSpec((C2, k * k), lambda n, s: (0, 0)),
                pl.BlockSpec((C2, 1), lambda n, s: (0, 0)),
                pl.BlockSpec((k, HsW), lambda n, s: (0, 0)),
            ],
            out_specs=pl.BlockSpec((1, C2, HsW), lambda n, s: (n, 0, s)),
            scratch_shapes=[pltpu.VMEM((C2, L), jnp.float32)],
        ),
        compiler_params=pltpu.CompilerParams(
            dimension_semantics=("parallel", "parallel"),
            vmem_limit_bytes=vmem_limit,
        ),
    )(x_flat, x_flat, x_flat, w1_f, b1_col, wdw_k, b2_col, colmask)

    return out_flat.reshape(N, C2, H, W)


# -----------------------------------------------------------------------------
# Synthetic params + references
# -----------------------------------------------------------------------------
def make_params(key, c1, c2, k):
    """Deterministic synthetic parameters matching LightConv(c1, c2, k) in eval mode."""
    keys = jax.random.split(key, 10)
    eps = 1e-5
    # conv1: nn.Conv2d(c1, c2, 1, bias=False) -> weight (c2, c1, 1, 1)
    w1_torch = 0.1 * jax.random.normal(keys[0], (c2, c1, 1, 1), jnp.float32)
    w1 = jnp.transpose(w1_torch[:, :, 0, 0], (1, 0))                 # (c1, c2)
    # bn1 (eval mode, running stats) folded to scale/bias
    g1 = 1.0 + 0.1 * jax.random.normal(keys[1], (c2,), jnp.float32)
    be1 = 0.1 * jax.random.normal(keys[2], (c2,), jnp.float32)
    rm1 = 0.1 * jax.random.normal(keys[3], (c2,), jnp.float32)
    rv1 = jax.random.uniform(keys[4], (c2,), jnp.float32, 0.5, 1.5)
    s1 = g1 / jnp.sqrt(rv1 + eps)
    b1 = be1 - rm1 * s1
    # conv2: depthwise nn.Conv2d(c2, c2, k, groups=c2, bias=False) -> (c2, 1, k, k)
    wdw_torch = 0.1 * jax.random.normal(keys[5], (c2, 1, k, k), jnp.float32)
    wdw = jnp.transpose(wdw_torch[:, 0, :, :], (1, 2, 0))            # (k, k, c2)
    # bn2 folded
    g2 = 1.0 + 0.1 * jax.random.normal(keys[6], (c2,), jnp.float32)
    be2 = 0.1 * jax.random.normal(keys[7], (c2,), jnp.float32)
    rm2 = 0.1 * jax.random.normal(keys[8], (c2,), jnp.float32)
    rv2 = jax.random.uniform(keys[9], (c2,), jnp.float32, 0.5, 1.5)
    s2 = g2 / jnp.sqrt(rv2 + eps)
    b2 = be2 - rm2 * s2
    return (w1, s1.reshape(1, c2), b1.reshape(1, c2), wdw,
            s2.reshape(1, c2), b2.reshape(1, c2))


def lightconv_reference(x_nchw, params, conv1_dtype=None):
    """Pure-JAX reference (mirrors the PyTorch eval-mode forward).

    With `conv1_dtype` set, the 1x1-conv operands are rounded to that dtype
    first (matching the kernel's bf16 MXU inputs), then convolved in f32.
    """
    w1, s1, b1, wdw, s2, b2 = params
    c2 = w1.shape[1]
    hi = jax.lax.Precision.HIGHEST
    w1_fold = w1 * s1                                                # (c1, c2)
    x_in = x_nchw
    if conv1_dtype is not None:
        w1_fold = w1_fold.astype(conv1_dtype).astype(jnp.float32)
        x_in = x_nchw.astype(conv1_dtype).astype(jnp.float32)
    w1_oihw = jnp.transpose(w1_fold, (1, 0))[:, :, None, None]       # (c2, c1, 1, 1)
    y = jax.lax.conv_general_dilated(x_in, w1_oihw, (1, 1), "SAME",
                                     dimension_numbers=("NCHW", "OIHW", "NCHW"),
                                     precision=hi)
    y = y + b1.reshape(1, c2, 1, 1)
    wdw_oihw = jnp.transpose(wdw * s2.reshape(1, 1, c2),
                             (2, 0, 1))[:, None, :, :]               # (c2, 1, k, k)
    z = jax.lax.conv_general_dilated(y, wdw_oihw, (1, 1), "SAME",
                                     dimension_numbers=("NCHW", "OIHW", "NCHW"),
                                     feature_group_count=c2, precision=hi)
    z = z + b2.reshape(1, c2, 1, 1)
    return jnp.maximum(z, 0.0)


if __name__ == "__main__":
    N, C1, C2, H, W, K = 2, 4, 32, 16, 16, 3
    key = jax.random.PRNGKey(0)
    kx, kp_ = jax.random.split(key)
    x = jax.random.normal(kx, (N, C1, H, W), jnp.float32)
    params = make_params(kp_, C1, C2, K)

    # max_rows_per_strip=8 -> 2 H-strips per image: exercises the halo DMA path,
    # all four pl.when edge branches, and gives the (batch, strip) grid 4 steps.
    out = lightconv_pallas(x, params, max_rows_per_strip=8)
    out = jax.block_until_ready(out)
    assert out.shape == (N, C2, H, W)

    # Structural check: reference using the same bf16-rounded conv1 operands.
    ref_bf16 = lightconv_reference(x, params, conv1_dtype=jnp.bfloat16)
    assert jnp.allclose(out, ref_bf16, atol=1e-4, rtol=1e-4), "mismatch vs bf16-conv1 reference"
    # End-to-end check against the pure-f32 module semantics (bounds bf16 rounding).
    ref_f32 = lightconv_reference(x, params)
    assert jnp.allclose(out, ref_f32, atol=5e-2, rtol=5e-2), "mismatch vs f32 reference"

    print("KERNEL_OK")
</pallas_src>

<mosaic_0001>
module attributes {stable_mosaic.version = 11 : i64} {
  func.func @kernel(%arg0: i32, %arg1: i32, %arg2: memref<1x4x128xf32, #tpu.memory_space<vmem>>, %arg3: memref<1x4x128xf32, #tpu.memory_space<vmem>>, %arg4: memref<1x4x128xf32, #tpu.memory_space<vmem>>, %arg5: memref<32x4xbf16, #tpu.memory_space<vmem>>, %arg6: memref<32x1xf32, #tpu.memory_space<vmem>>, %arg7: memref<32x9xf32, #tpu.memory_space<vmem>>, %arg8: memref<32x1xf32, #tpu.memory_space<vmem>>, %arg9: memref<3x128xf32, #tpu.memory_space<vmem>>, %arg10: memref<1x32x128xf32, #tpu.memory_space<vmem>>, %arg11: memref<32x384xf32, #tpu.memory_space<vmem>>) attributes {dimension_semantics = [#tpu.dimension_semantics<parallel>, #tpu.dimension_semantics<parallel>], iteration_bounds = array<i64: 2, 2>, scalar_prefetch = 0 : i64, scratch_operands = 1 : i64, tpu.core_type = #tpu.core_type<tc>, window_params = [{transform_indices = @transform_0, window_bounds = array<i64: 1, 4, 128>}, {transform_indices = @transform_1, window_bounds = array<i64: 1, 4, 128>}, {transform_indices = @transform_2, window_bounds = array<i64: 1, 4, 128>}, {pipeline_mode = #tpu.pipeline_mode<synchronous>, transform_indices = @transform_3, window_bounds = array<i64: 32, 4>}, {pipeline_mode = #tpu.pipeline_mode<synchronous>, transform_indices = @transform_4, window_bounds = array<i64: 32, 1>}, {pipeline_mode = #tpu.pipeline_mode<synchronous>, transform_indices = @transform_5, window_bounds = array<i64: 32, 9>}, {pipeline_mode = #tpu.pipeline_mode<synchronous>, transform_indices = @transform_6, window_bounds = array<i64: 32, 1>}, {pipeline_mode = #tpu.pipeline_mode<synchronous>, transform_indices = @transform_7, window_bounds = array<i64: 3, 128>}, {transform_indices = @transform_8, window_bounds = array<i64: 1, 32, 128>}]} {
    %c0 = arith.constant 0 : index
    %c0_0 = arith.constant 0 : index
    %0 = vector.load %arg5[%c0, %c0_0] : memref<32x4xbf16, #tpu.memory_space<vmem>>, vector<32x4xbf16>
    %c0_1 = arith.constant 0 : index
    %c0_2 = arith.constant 0 : index
    %1 = vector.load %arg6[%c0_1, %c0_2] : memref<32x1xf32, #tpu.memory_space<vmem>>, vector<32x1xf32>
    %c0_3 = arith.constant 0 : index
    %c0_4 = arith.constant 0 : index
    %c0_5 = arith.constant 0 : index
    %2 = vector.load %arg3[%c0_3, %c0_4, %c0_5] : memref<1x4x128xf32, #tpu.memory_space<vmem>>, vector<1x4x128xf32>
    %3 = vector.shape_cast %2 : vector<1x4x128xf32> to vector<4x128xf32>
    %4 = arith.truncf %3 : vector<4x128xf32> to vector<4x128xbf16>
    %cst = arith.constant dense<0.000000e+00> : vector<32x128xf32>
    %5 = tpu.matmul %0, %4, %cst {dimension_numbers = #tpu.dot_dimension_numbers<[1], [0], [0], [1], [0, 0, 1, 1], [], []>} : vector<32x4xbf16>, vector<4x128xbf16>, vector<32x128xf32> -> vector<32x128xf32>
    %6 = vector.broadcast %1 : vector<32x1xf32> to vector<32x128xf32>
    %7 = arith.addf %5, %6 : vector<32x128xf32>
    %c0_6 = arith.constant 0 : index
    %c128 = arith.constant 128 : index
    %8 = vector.load %arg11[%c0_6, %c128] : memref<32x384xf32, #tpu.memory_space<vmem>>, vector<32x128xf32>
    tpu.vector_store %arg11[%c0_6, %c128], %7 {strides = array<i32>} : memref<32x384xf32, #tpu.memory_space<vmem>>, vector<32x128xf32>,
    %c0_i32 = arith.constant 0 : i32
    %9 = arith.cmpi eq, %arg1, %c0_i32 : i32
    %10 = arith.extui %9 : i1 to i32
    %c0_i32_7 = arith.constant 0 : i32
    %11 = arith.cmpi ne, %10, %c0_i32_7 : i32
    scf.if %11 {
      %cst_29 = arith.constant 0.000000e+00 : f32
      %96 = vector.broadcast %cst_29 : f32 to vector<32x128xf32>
      %c0_30 = arith.constant 0 : index
      %c0_31 = arith.constant 0 : index
      %97 = vector.load %arg11[%c0_30, %c0_31] : memref<32x384xf32, #tpu.memory_space<vmem>>, vector<32x128xf32>
      tpu.vector_store %arg11[%c0_30, %c0_31], %96 {strides = array<i32>} : memref<32x384xf32, #tpu.memory_space<vmem>>, vector<32x128xf32>,
    } else {
    }
    %c0_i32_8 = arith.constant 0 : i32
    %12 = arith.cmpi sgt, %arg1, %c0_i32_8 : i32
    %13 = arith.extui %12 : i1 to i32
    %c0_i32_9 = arith.constant 0 : i32
    %14 = arith.cmpi ne, %13, %c0_i32_9 : i32
    scf.if %14 {
      %c0_29 = arith.constant 0 : index
      %c0_30 = arith.constant 0 : index
      %c0_31 = arith.constant 0 : index
      %96 = vector.load %arg2[%c0_29, %c0_30, %c0_31] : memref<1x4x128xf32, #tpu.memory_space<vmem>>, vector<1x4x128xf32>
      %97 = vector.shape_cast %96 : vector<1x4x128xf32> to vector<4x128xf32>
      %98 = arith.truncf %97 : vector<4x128xf32> to vector<4x128xbf16>
      %cst_32 = arith.constant dense<0.000000e+00> : vector<32x128xf32>
      %99 = tpu.matmul %0, %98, %cst_32 {dimension_numbers = #tpu.dot_dimension_numbers<[1], [0], [0], [1], [0, 0, 1, 1], [], []>} : vector<32x4xbf16>, vector<4x128xbf16>, vector<32x128xf32> -> vector<32x128xf32>
      %100 = vector.broadcast %1 : vector<32x1xf32> to vector<32x128xf32>
      %101 = arith.addf %99, %100 : vector<32x128xf32>
      %c0_33 = arith.constant 0 : index
      %c0_34 = arith.constant 0 : index
      %102 = vector.load %arg11[%c0_33, %c0_34] : memref<32x384xf32, #tpu.memory_space<vmem>>, vector<32x128xf32>
      tpu.vector_store %arg11[%c0_33, %c0_34], %101 {strides = array<i32>} : memref<32x384xf32, #tpu.memory_space<vmem>>, vector<32x128xf32>,
    } else {
    }
    %c1_i32 = arith.constant 1 : i32
    %15 = arith.cmpi eq, %arg1, %c1_i32 : i32
    %16 = arith.extui %15 : i1 to i32
    %c0_i32_10 = arith.constant 0 : i32
    %17 = arith.cmpi ne, %16, %c0_i32_10 : i32
    scf.if %17 {
      %cst_29 = arith.constant 0.000000e+00 : f32
      %96 = vector.broadcast %cst_29 : f32 to vector<32x128xf32>
      %c0_30 = arith.constant 0 : index
      %c256 = arith.constant 256 : index
      %97 = vector.load %arg11[%c0_30, %c256] : memref<32x384xf32, #tpu.memory_space<vmem>>, vector<32x128xf32>
      tpu.vector_store %arg11[%c0_30, %c256], %96 {strides = array<i32>} : memref<32x384xf32, #tpu.memory_space<vmem>>, vector<32x128xf32>,
    } else {
    }
    %c1_i32_11 = arith.constant 1 : i32
    %18 = arith.cmpi slt, %arg1, %c1_i32_11 : i32
    %19 = arith.extui %18 : i1 to i32
    %c0_i32_12 = arith.constant 0 : i32
    %20 = arith.cmpi ne, %19, %c0_i32_12 : i32
    scf.if %20 {
      %c0_29 = arith.constant 0 : index
      %c0_30 = arith.constant 0 : index
      %c0_31 = arith.constant 0 : index
      %96 = vector.load %arg4[%c0_29, %c0_30, %c0_31] : memref<1x4x128xf32, #tpu.memory_space<vmem>>, vector<1x4x128xf32>
      %97 = vector.shape_cast %96 : vector<1x4x128xf32> to vector<4x128xf32>
      %98 = arith.truncf %97 : vector<4x128xf32> to vector<4x128xbf16>
      %cst_32 = arith.constant dense<0.000000e+00> : vector<32x128xf32>
      %99 = tpu.matmul %0, %98, %cst_32 {dimension_numbers = #tpu.dot_dimension_numbers<[1], [0], [0], [1], [0, 0, 1, 1], [], []>} : vector<32x4xbf16>, vector<4x128xbf16>, vector<32x128xf32> -> vector<32x128xf32>
      %100 = vector.broadcast %1 : vector<32x1xf32> to vector<32x128xf32>
      %101 = arith.addf %99, %100 : vector<32x128xf32>
      %c0_33 = arith.constant 0 : index
      %c256 = arith.constant 256 : index
      %102 = vector.load %arg11[%c0_33, %c256] : memref<32x384xf32, #tpu.memory_space<vmem>>, vector<32x128xf32>
      tpu.vector_store %arg11[%c0_33, %c256], %101 {strides = array<i32>} : memref<32x384xf32, #tpu.memory_space<vmem>>, vector<32x128xf32>,
    } else {
    }
    %c0_13 = arith.constant 0 : index
    %c0_14 = arith.constant 0 : index
    %21 = vector.load %arg7[%c0_13, %c0_14] : memref<32x9xf32, #tpu.memory_space<vmem>>, vector<32x9xf32>
    %c0_15 = arith.constant 0 : index
    %c0_16 = arith.constant 0 : index
    %22 = vector.load %arg9[%c0_15, %c0_16] : memref<3x128xf32, #tpu.memory_space<vmem>>, vector<3x128xf32>
    %c0_17 = arith.constant 0 : index
    %c0_18 = arith.constant 0 : index
    %23 = vector.load %arg11[%c0_17, %c0_18] : memref<32x384xf32, #tpu.memory_space<vmem>>, vector<32x256xf32>
    %24 = vector.extract_strided_slice %23 {offsets = [0, 111], sizes = [32, 128], strides = [1, 1]} : vector<32x256xf32> to vector<32x128xf32>
    %25 = vector.extract_strided_slice %22 {offsets = [0, 0], sizes = [1, 128], strides = [1, 1]} : vector<3x128xf32> to vector<1x128xf32>
    %26 = vector.broadcast %25 : vector<1x128xf32> to vector<32x128xf32>
    %27 = arith.mulf %24, %26 : vector<32x128xf32>
    %28 = vector.extract_strided_slice %21 {offsets = [0, 0], sizes = [32, 1], strides = [1, 1]} : vector<32x9xf32> to vector<32x1xf32>
    %29 = vector.broadcast %28 : vector<32x1xf32> to vector<32x128xf32>
    %30 = arith.mulf %27, %29 : vector<32x128xf32>
    %31 = vector.extract_strided_slice %23 {offsets = [0, 112], sizes = [32, 128], strides = [1, 1]} : vector<32x256xf32> to vector<32x128xf32>
    %32 = vector.extract_strided_slice %21 {offsets = [0, 1], sizes = [32, 1], strides = [1, 1]} : vector<32x9xf32> to vector<32x1xf32>
    %33 = vector.broadcast %32 : vector<32x1xf32> to vector<32x128xf32>
    %34 = arith.mulf %31, %33 : vector<32x128xf32>
    %35 = arith.addf %30, %34 : vector<32x128xf32>
    %36 = vector.extract_strided_slice %23 {offsets = [0, 113], sizes = [32, 128], strides = [1, 1]} : vector<32x256xf32> to vector<32x128xf32>
    %37 = vector.extract_strided_slice %22 {offsets = [2, 0], sizes = [1, 128], strides = [1, 1]} : vector<3x128xf32> to vector<1x128xf32>
    %38 = vector.broadcast %37 : vector<1x128xf32> to vector<32x128xf32>
    %39 = arith.mulf %36, %38 : vector<32x128xf32>
    %40 = vector.extract_strided_slice %21 {offsets = [0, 2], sizes = [32, 1], strides = [1, 1]} : vector<32x9xf32> to vector<32x1xf32>
    %41 = vector.broadcast %40 : vector<32x1xf32> to vector<32x128xf32>
    %42 = arith.mulf %39, %41 : vector<32x128xf32>
    %43 = arith.addf %35, %42 : vector<32x128xf32>
    %c0_19 = arith.constant 0 : index
    %c0_20 = arith.constant 0 : index
    %44 = vector.load %arg11[%c0_19, %c0_20] : memref<32x384xf32, #tpu.memory_space<vmem>>, vector<32x384xf32>
    %45 = vector.extract_strided_slice %44 {offsets = [0, 127], sizes = [32, 128], strides = [1, 1]} : vector<32x384xf32> to vector<32x128xf32>
    %46 = vector.extract_strided_slice %22 {offsets = [0, 0], sizes = [1, 128], strides = [1, 1]} : vector<3x128xf32> to vector<1x128xf32>
    %47 = vector.broadcast %46 : vector<1x128xf32> to vector<32x128xf32>
    %48 = arith.mulf %45, %47 : vector<32x128xf32>
    %49 = vector.extract_strided_slice %21 {offsets = [0, 3], sizes = [32, 1], strides = [1, 1]} : vector<32x9xf32> to vector<32x1xf32>
    %50 = vector.broadcast %49 : vector<32x1xf32> to vector<32x128xf32>
    %51 = arith.mulf %48, %50 : vector<32x128xf32>
    %52 = arith.addf %43, %51 : vector<32x128xf32>
    %53 = vector.extract_strided_slice %44 {offsets = [0, 128], sizes = [32, 128], strides = [1, 1]} : vector<32x384xf32> to vector<32x128xf32>
    %54 = vector.extract_strided_slice %21 {offsets = [0, 4], sizes = [32, 1], strides = [1, 1]} : vector<32x9xf32> to vector<32x1xf32>
    %55 = vector.broadcast %54 : vector<32x1xf32> to vector<32x128xf32>
    %56 = arith.mulf %53, %55 : vector<32x128xf32>
    %57 = arith.addf %52, %56 : vector<32x128xf32>
    %58 = vector.extract_strided_slice %44 {offsets = [0, 129], sizes = [32, 128], strides = [1, 1]} : vector<32x384xf32> to vector<32x128xf32>
    %59 = vector.extract_strided_slice %22 {offsets = [2, 0], sizes = [1, 128], strides = [1, 1]} : vector<3x128xf32> to vector<1x128xf32>
    %60 = vector.broadcast %59 : vector<1x128xf32> to vector<32x128xf32>
    %61 = arith.mulf %58, %60 : vector<32x128xf32>
    %62 = vector.extract_strided_slice %21 {offsets = [0, 5], sizes = [32, 1], strides = [1, 1]} : vector<32x9xf32> to vector<32x1xf32>
    %63 = vector.broadcast %62 : vector<32x1xf32> to vector<32x128xf32>
    %64 = arith.mulf %61, %63 : vector<32x128xf32>
    %65 = arith.addf %57, %64 : vector<32x128xf32>
    %c0_21 = arith.constant 0 : index
    %c128_22 = arith.constant 128 : index
    %66 = vector.load %arg11[%c0_21, %c128_22] : memref<32x384xf32, #tpu.memory_space<vmem>>, vector<32x256xf32>
    %67 = vector.extract_strided_slice %66 {offsets = [0, 15], sizes = [32, 128], strides = [1, 1]} : vector<32x256xf32> to vector<32x128xf32>
    %68 = vector.extract_strided_slice %22 {offsets = [0, 0], sizes = [1, 128], strides = [1, 1]} : vector<3x128xf32> to vector<1x128xf32>
    %69 = vector.broadcast %68 : vector<1x128xf32> to vector<32x128xf32>
    %70 = arith.mulf %67, %69 : vector<32x128xf32>
    %71 = vector.extract_strided_slice %21 {offsets = [0, 6], sizes = [32, 1], strides = [1, 1]} : vector<32x9xf32> to vector<32x1xf32>
    %72 = vector.broadcast %71 : vector<32x1xf32> to vector<32x128xf32>
    %73 = arith.mulf %70, %72 : vector<32x128xf32>
    %74 = arith.addf %65, %73 : vector<32x128xf32>
    %75 = vector.extract_strided_slice %66 {offsets = [0, 16], sizes = [32, 128], strides = [1, 1]} : vector<32x256xf32> to vector<32x128xf32>
    %76 = vector.extract_strided_slice %21 {offsets = [0, 7], sizes = [32, 1], strides = [1, 1]} : vector<32x9xf32> to vector<32x1xf32>
    %77 = vector.broadcast %76 : vector<32x1xf32> to vector<32x128xf32>
    %78 = arith.mulf %75, %77 : vector<32x128xf32>
    %79 = arith.addf %74, %78 : vector<32x128xf32>
    %80 = vector.extract_strided_slice %66 {offsets = [0, 17], sizes = [32, 128], strides = [1, 1]} : vector<32x256xf32> to vector<32x128xf32>
    %81 = vector.extract_strided_slice %22 {offsets = [2, 0], sizes = [1, 128], strides = [1, 1]} : vector<3x128xf32> to vector<1x128xf32>
    %82 = vector.broadcast %81 : vector<1x128xf32> to vector<32x128xf32>
    %83 = arith.mulf %80, %82 : vector<32x128xf32>
    %84 = vector.extract_strided_slice %21 {offsets = [0, 8], sizes = [32, 1], strides = [1, 1]} : vector<32x9xf32> to vector<32x1xf32>
    %85 = vector.broadcast %84 : vector<32x1xf32> to vector<32x128xf32>
    %86 = arith.mulf %83, %85 : vector<32x128xf32>
    %87 = arith.addf %79, %86 : vector<32x128xf32>
    %c0_23 = arith.constant 0 : index
    %c0_24 = arith.constant 0 : index
    %88 = vector.load %arg8[%c0_23, %c0_24] : memref<32x1xf32, #tpu.memory_space<vmem>>, vector<32x1xf32>
    %89 = vector.broadcast %88 : vector<32x1xf32> to vector<32x128xf32>
    %90 = arith.addf %87, %89 : vector<32x128xf32>
    %cst_25 = arith.constant 0.000000e+00 : f32
    %91 = vector.broadcast %cst_25 : f32 to vector<32x128xf32>
    %92 = arith.maximumf %90, %91 : vector<32x128xf32>
    %c0_26 = arith.constant 0 : index
    %c0_27 = arith.constant 0 : index
    %c0_28 = arith.constant 0 : index
    %93 = vector.load %arg10[%c0_26, %c0_27, %c0_28] : memref<1x32x128xf32, #tpu.memory_space<vmem>>, vector<1x32x128xf32>
    %94 = vector.shape_cast %93 : vector<1x32x128xf32> to vector<32x128xf32>
    %95 = vector.shape_cast %92 : vector<32x128xf32> to vector<1x32x128xf32>
    tpu.vector_store %arg10[%c0_26, %c0_27, %c0_28], %95 {strides = array<i32>} : memref<1x32x128xf32, #tpu.memory_space<vmem>>, vector<1x32x128xf32>,
    return
  }
  func.func @transform_0(%arg0: i32, %arg1: i32) -> (i32, i32, i32) {
    %c1_i32 = arith.constant 1 : i32
    %0 = arith.muli %arg1, %c1_i32 : i32
    %c1_i32_0 = arith.constant 1 : i32
    %1 = arith.subi %0, %c1_i32_0 : i32
    %c0_i32 = arith.constant 0 : i32
    %2 = arith.maxsi %1, %c0_i32 : i32
    %c0_i32_1 = arith.constant 0 : i32
    %c0_i32_2 = arith.constant 0 : i32
    return %arg0, %c0_i32_1, %2 : i32, i32, i32
  }
  func.func @transform_1(%arg0: i32, %arg1: i32) -> (i32, i32, i32) {
    %c0_i32 = arith.constant 0 : i32
    %c0_i32_0 = arith.constant 0 : i32
    return %arg0, %c0_i32, %arg1 : i32, i32, i32
  }
  func.func @transform_2(%arg0: i32, %arg1: i32) -> (i32, i32, i32) {
    %c1_i32 = arith.constant 1 : i32
    %0 = arith.addi %arg1, %c1_i32 : i32
    %c1_i32_0 = arith.constant 1 : i32
    %1 = arith.muli %0, %c1_i32_0 : i32
    %c1_i32_1 = arith.constant 1 : i32
    %2 = arith.minsi %1, %c1_i32_1 : i32
    %c0_i32 = arith.constant 0 : i32
    %c0_i32_2 = arith.constant 0 : i32
    return %arg0, %c0_i32, %2 : i32, i32, i32
  }
  func.func @transform_3(%arg0: i32, %arg1: i32) -> (i32, i32) {
    %c0_i32 = arith.constant 0 : i32
    %c0_i32_0 = arith.constant 0 : i32
    %c0_i32_1 = arith.constant 0 : i32
    return %c0_i32, %c0_i32_0 : i32, i32
  }
  func.func @transform_4(%arg0: i32, %arg1: i32) -> (i32, i32) {
    %c0_i32 = arith.constant 0 : i32
    %c0_i32_0 = arith.constant 0 : i32
    %c0_i32_1 = arith.constant 0 : i32
    return %c0_i32, %c0_i32_0 : i32, i32
  }
  func.func @transform_5(%arg0: i32, %arg1: i32) -> (i32, i32) {
    %c0_i32 = arith.constant 0 : i32
    %c0_i32_0 = arith.constant 0 : i32
    %c0_i32_1 = arith.constant 0 : i32
    return %c0_i32, %c0_i32_0 : i32, i32
  }
  func.func @transform_6(%arg0: i32, %arg1: i32) -> (i32, i32) {
    %c0_i32 = arith.constant 0 : i32
    %c0_i32_0 = arith.constant 0 : i32
    %c0_i32_1 = arith.constant 0 : i32
    return %c0_i32, %c0_i32_0 : i32, i32
  }
  func.func @transform_7(%arg0: i32, %arg1: i32) -> (i32, i32) {
    %c0_i32 = arith.constant 0 : i32
    %c0_i32_0 = arith.constant 0 : i32
    %c0_i32_1 = arith.constant 0 : i32
    return %c0_i32, %c0_i32_0 : i32, i32
  }
  func.func @transform_8(%arg0: i32, %arg1: i32) -> (i32, i32, i32) {
    %c0_i32 = arith.constant 0 : i32
    %c0_i32_0 = arith.constant 0 : i32
    return %arg0, %c0_i32, %arg1 : i32, i32, i32
  }
}

</mosaic_0001>

<llo_original>
// kernel: tpu_custom_call.1
$region0: #{tpu_custom_call.1}
  #allocation0 [shape = 'u32[]', space=smem, size = 0x4, offset = 0x4, fixed_abs, tag = 'smem constant byte address 0x4 - core index']
  #allocation1 [shape = 'u32[144,128]{1,0:T(1,128)}', space=vmem, size = 0x12000, scoped, tag = 'internal scratch']
  #allocation2 [shape = 'f32[32,384]{1,0:T(8,128)}', space=vmem, size = 0xc000, scoped, tag = 'scratch operand']
  %s0 = inlined_call_operand.vmem [shape: f32[2,4,256], index: 0, kind: input, shape index: {}]
  %s1 = inlined_call_operand.vmem [shape: f32[2,4,256], index: 1, kind: input, shape index: {}]
  %s2 = inlined_call_operand.vmem [shape: f32[2,4,256], index: 2, kind: input, shape index: {}]
  %s3 = inlined_call_operand.vmem [shape: bf16[32,4], index: 3, kind: input, shape index: {}]
  %s4 = inlined_call_operand.vmem [shape: f32[32,1], index: 4, kind: input, shape index: {}]
  %s5 = inlined_call_operand.vmem [shape: f32[32,9], index: 5, kind: input, shape index: {}]
  %s6 = inlined_call_operand.vmem [shape: f32[32,1], index: 6, kind: input, shape index: {}]
  %s7 = inlined_call_operand.vmem [shape: f32[3,128], index: 7, kind: input, shape index: {}]
  %s8 = inlined_call_operand.hbm [shape: f32[2,32,256], index: 8, kind: output, shape index: {}]
  %s9 = sld [smem:[#allocation0]]
  $region81: #{tpu_custom_call.1} parent=0
    _
  %s11 = ssub.s32 1, %s9
  %s12 = scalar_select 0, %s11, %s9
  $region1: #{tpu_custom_call.1} parent=0
    #allocation3 [shape = 'u8[32768]{0}', space=vmem, size = 0x8000, scoped, tag = 'output window, operand 0']
    #allocation4 [shape = 's32[2]{0}', space=sflag, size = 0x8, scoped, tag = 'scoped memory for tpu_custom_call.1']
    %13 = vsyncpa [#allocation4], 0
    %s14 = scalar_lea.sflag [#allocation4], 1
    %15 = vsyncpa %s14, 0
    loop: start=0, step=1, limit=6
    $region2: #{tpu_custom_call.1} parent=1 // loop_pre_header
      _
    $region3: #{tpu_custom_call.1} parent=1 // loop_header
      %s17 = sphi 0, %s21
      %p18 = scmp.ge.s32.totalorder %s17, 6
      %s24 = sphi 0, %s36
      %s25 = sphi 0, %s32
      %s26 = sphi 0, %s24
      %s27 = sphi 0, %s25
      %s28 = sphi 0, %s26
      %s29 = sphi 0, %s27
      %s47 = sphi 0, %s49
      %s50 = sphi 0, %s47
      %s51 = sphi 0, %s50
      %s67 = sphi 0, %s51
      %s75 = sphi 0, %s77
      %s78 = sphi 0, %s75
      %s79 = sphi 0, %s78
      %s95 = sphi 0, %s79
      %s109 = sphi 0, %s111
      %s112 = sphi 0, %s109
      %s113 = sphi 0, %s112
      %s129 = sphi 0, %s113
      %s133 = sphi 0, %s133
      %s135 = sphi 0, %s133
      %s136 = sphi 0, %s135
      %s150 = sphi 0, %s136
      %s154 = sphi 0, %s154
      %s156 = sphi 0, %s154
      %s157 = sphi 0, %s156
      %s171 = sphi 0, %s157
      %s175 = sphi 0, %s175
      %s177 = sphi 0, %s175
      %s178 = sphi 0, %s177
      %s192 = sphi 0, %s178
      %s196 = sphi 0, %s196
      %s198 = sphi 0, %s196
      %s199 = sphi 0, %s198
      %s213 = sphi 0, %s199
      %s217 = sphi 0, %s217
      %s219 = sphi 0, %s217
      %s220 = sphi 0, %s219
      %s234 = sphi 0, %s220
      %s242 = sphi 0, %s244
      %s245 = sphi 0, %s242
      %s246 = sphi 0, %s245
      %s262 = sphi 0, %s246
    $region4: #{tpu_custom_call.1} parent=1 // loop_header_branch
      %20 = sbr.rel (%p18) target = $region8
    $region5: #{tpu_custom_call.1} parent=1 // loop_body
      %s22 = ssub.s32 %s17, 1
      %s23 = ssub.s32 %s17, 2
      %s30 = sadd.s32 1, %s25
      %p31 = scmp.ge.s32.totalorder %s30, 2
      %s32 = scalar_select %p31, 0, %s30
      %s33 = sadd.s32 1, %s24
      %s34 = scalar_select %p31, %s33, %s24
      %p35 = scmp.ge.s32.totalorder %s34, 2
      %s36 = scalar_select %p35, 0, %s34
      %s37 = ssub.s32 %s25, 1
      %p38 = scmp.gt.s32.totalorder %s37, 0
      %s39 = scalar_select %p38, %s37, 0
      %s40 = ssub.s32 %s32, 1
      %p41 = scmp.gt.s32.totalorder %s40, 0
      %s42 = scalar_select %p41, %s40, 0
      %s43 = ssub.s32 %s24, %s36
      %s44 = ssub.s32 %s39, %s42
      %s45 = sor.u32 %s43, %s44
      %p46 = scmp.eq.s32.totalorder %s45, 0
      %s48 = sadd.s32 %s47, 1
      %s49 = scalar_select %p46, %s47, %s48
      %p52 = pneg %p46
      %p53 = scmp.eq.s32.totalorder %s17, 3
      %p54 = por %p52, %p53
      %p55 = scmp.ne.s32.totalorder %s47, %s50
      %p56 = scmp.eq.s32.totalorder %s17, 0
      %p57 = por %p55, %p56
      %p58 = scmp.ne.s32.totalorder %s47, %s50
      %p59 = scmp.eq.s32.totalorder %s22, 3
      %p60 = por %p58, %p59
      %p61 = scmp.ne.s32.totalorder %s50, %s51
      %p62 = scmp.eq.s32.totalorder %s22, 0
      %p63 = por %p61, %p62
      %p64 = scmp.ne.s32.totalorder %s50, %s51
      %p65 = scmp.eq.s32.totalorder %s23, 3
      %p66 = por %p64, %p65
      %p68 = scmp.ne.s32.totalorder %s51, %s67
      %p69 = scmp.eq.s32.totalorder %s23, 0
      %p70 = por %p68, %p69
      %s71 = ssub.s32 %s24, %s36
      %s72 = ssub.s32 %s25, %s32
      %s73 = sor.u32 %s71, %s72
      %p74 = scmp.eq.s32.totalorder %s73, 0
      %s76 = sadd.s32 %s75, 1
      %s77 = scalar_select %p74, %s75, %s76
      %p80 = pneg %p74
      %p81 = scmp.eq.s32.totalorder %s17, 3
      %p82 = por %p80, %p81
      %p83 = scmp.ne.s32.totalorder %s75, %s78
      %p84 = scmp.eq.s32.totalorder %s17, 0
      %p85 = por %p83, %p84
      %p86 = scmp.ne.s32.totalorder %s75, %s78
      %p87 = scmp.eq.s32.totalorder %s22, 3
      %p88 = por %p86, %p87
      %p89 = scmp.ne.s32.totalorder %s78, %s79
      %p90 = scmp.eq.s32.totalorder %s22, 0
      %p91 = por %p89, %p90
      %p92 = scmp.ne.s32.totalorder %s78, %s79
      %p93 = scmp.eq.s32.totalorder %s23, 3
      %p94 = por %p92, %p93
      %p96 = scmp.ne.s32.totalorder %s79, %s95
      %p97 = scmp.eq.s32.totalorder %s23, 0
      %p98 = por %p96, %p97
      %s99 = sadd.s32 %s25, 1
      %p100 = scmp.lt.s32.totalorder %s99, 1
      %s101 = scalar_select %p100, %s99, 1
      %s102 = sadd.s32 %s32, 1
      %p103 = scmp.lt.s32.totalorder %s102, 1
      %s104 = scalar_select %p103, %s102, 1
      %s105 = ssub.s32 %s24, %s36
      %s106 = ssub.s32 %s101, %s104
      %s107 = sor.u32 %s105, %s106
      %p108 = scmp.eq.s32.totalorder %s107, 0
      %s110 = sadd.s32 %s109, 1
      %s111 = scalar_select %p108, %s109, %s110
      %p114 = pneg %p108
      %p115 = scmp.eq.s32.totalorder %s17, 3
      %p116 = por %p114, %p115
      %p117 = scmp.ne.s32.totalorder %s109, %s112
      %p118 = scmp.eq.s32.totalorder %s17, 0
      %p119 = por %p117, %p118
      %p120 = scmp.ne.s32.totalorder %s109, %s112
      %p121 = scmp.eq.s32.totalorder %s22, 3
      %p122 = por %p120, %p121
      %p123 = scmp.ne.s32.totalorder %s112, %s113
      %p124 = scmp.eq.s32.totalorder %s22, 0
      %p125 = por %p123, %p124
      %p126 = scmp.ne.s32.totalorder %s112, %s113
      %p127 = scmp.eq.s32.totalorder %s23, 3
      %p128 = por %p126, %p127
      %p130 = scmp.ne.s32.totalorder %s113, %s129
      %p131 = scmp.eq.s32.totalorder %s23, 0
      %p132 = por %p130, %p131
      %s134 = sadd.s32 %s133, 1
      %p137 = scmp.eq.s32.totalorder %s17, 3
      %p138 = scmp.ne.s32.totalorder %s133, %s135
      %p139 = scmp.eq.s32.totalorder %s17, 0
      %p140 = por %p138, %p139
      %p141 = scmp.ne.s32.totalorder %s133, %s135
      %p142 = scmp.eq.s32.totalorder %s22, 3
      %p143 = por %p141, %p142
      %p144 = scmp.ne.s32.totalorder %s135, %s136
      %p145 = scmp.eq.s32.totalorder %s22, 0
      %p146 = por %p144, %p145
      %p147 = scmp.ne.s32.totalorder %s135, %s136
      %p148 = scmp.eq.s32.totalorder %s23, 3
      %p149 = por %p147, %p148
      %p151 = scmp.ne.s32.totalorder %s136, %s150
      %p152 = scmp.eq.s32.totalorder %s23, 0
      %p153 = por %p151, %p152
      %s155 = sadd.s32 %s154, 1
      %p158 = scmp.eq.s32.totalorder %s17, 3
      %p159 = scmp.ne.s32.totalorder %s154, %s156
      %p160 = scmp.eq.s32.totalorder %s17, 0
      %p161 = por %p159, %p160
      %p162 = scmp.ne.s32.totalorder %s154, %s156
      %p163 = scmp.eq.s32.totalorder %s22, 3
      %p164 = por %p162, %p163
      %p165 = scmp.ne.s32.totalorder %s156, %s157
      %p166 = scmp.eq.s32.totalorder %s22, 0
      %p167 = por %p165, %p166
      %p168 = scmp.ne.s32.totalorder %s156, %s157
      %p169 = scmp.eq.s32.totalorder %s23, 3
      %p170 = por %p168, %p169
      %p172 = scmp.ne.s32.totalorder %s157, %s171
      %p173 = scmp.eq.s32.totalorder %s23, 0
      %p174 = por %p172, %p173
      %s176 = sadd.s32 %s175, 1
      %p179 = scmp.eq.s32.totalorder %s17, 3
      %p180 = scmp.ne.s32.totalorder %s175, %s177
      %p181 = scmp.eq.s32.totalorder %s17, 0
      %p182 = por %p180, %p181
      %p183 = scmp.ne.s32.totalorder %s175, %s177
      %p184 = scmp.eq.s32.totalorder %s22, 3
      %p185 = por %p183, %p184
      %p186 = scmp.ne.s32.totalorder %s177, %s178
      %p187 = scmp.eq.s32.totalorder %s22, 0
      %p188 = por %p186, %p187
      %p189 = scmp.ne.s32.totalorder %s177, %s178
      %p190 = scmp.eq.s32.totalorder %s23, 3
      %p191 = por %p189, %p190
      %p193 = scmp.ne.s32.totalorder %s178, %s192
      %p194 = scmp.eq.s32.totalorder %s23, 0
      %p195 = por %p193, %p194
      %s197 = sadd.s32 %s196, 1
      %p200 = scmp.eq.s32.totalorder %s17, 3
      %p201 = scmp.ne.s32.totalorder %s196, %s198
      %p202 = scmp.eq.s32.totalorder %s17, 0
      %p203 = por %p201, %p202
      %p204 = scmp.ne.s32.totalorder %s196, %s198
      %p205 = scmp.eq.s32.totalorder %s22, 3
      %p206 = por %p204, %p205
      %p207 = scmp.ne.s32.totalorder %s198, %s199
      %p208 = scmp.eq.s32.totalorder %s22, 0
      %p209 = por %p207, %p208
      %p210 = scmp.ne.s32.totalorder %s198, %s199
      %p211 = scmp.eq.s32.totalorder %s23, 3
      %p212 = por %p210, %p211
      %p214 = scmp.ne.s32.totalorder %s199, %s213
      %p215 = scmp.eq.s32.totalorder %s23, 0
      %p216 = por %p214, %p215
      %s218 = sadd.s32 %s217, 1
      %p221 = scmp.eq.s32.totalorder %s17, 3
      %p222 = scmp.ne.s32.totalorder %s217, %s219
      %p223 = scmp.eq.s32.totalorder %s17, 0
      %p224 = por %p222, %p223
      %p225 = scmp.ne.s32.totalorder %s217, %s219
      %p226 = scmp.eq.s32.totalorder %s22, 3
      %p227 = por %p225, %p226
      %p228 = scmp.ne.s32.totalorder %s219, %s220
      %p229 = scmp.eq.s32.totalorder %s22, 0
      %p230 = por %p228, %p229
      %p231 = scmp.ne.s32.totalorder %s219, %s220
      %p232 = scmp.eq.s32.totalorder %s23, 3
      %p233 = por %p231, %p232
      %p235 = scmp.ne.s32.totalorder %s220, %s234
      %p236 = scmp.eq.s32.totalorder %s23, 0
      %p237 = por %p235, %p236
      %s238 = ssub.s32 %s24, %s36
      %s239 = ssub.s32 %s25, %s32
      %s240 = sor.u32 %s238, %s239
      %p241 = scmp.eq.s32.totalorder %s240, 0
      %s243 = sadd.s32 %s242, 1
      %s244 = scalar_select %p241, %s242, %s243
      %p247 = pneg %p241
      %p248 = scmp.eq.s32.totalorder %s17, 3
      %p249 = por %p247, %p248
      %p250 = scmp.ne.s32.totalorder %s242, %s245
      %p251 = scmp.eq.s32.totalorder %s17, 0
      %p252 = por %p250, %p251
      %p253 = scmp.ne.s32.totalorder %s242, %s245
      %p254 = scmp.eq.s32.totalorder %s22, 3
      %p255 = por %p253, %p254
      %p256 = scmp.ne.s32.totalorder %s245, %s246
      %p257 = scmp.eq.s32.totalorder %s22, 0
      %p258 = por %p256, %p257
      %p259 = scmp.ne.s32.totalorder %s245, %s246
      %p260 = scmp.eq.s32.totalorder %s23, 3
      %p261 = por %p259, %p260
      %p263 = scmp.ne.s32.totalorder %s246, %s262
      %p264 = scmp.eq.s32.totalorder %s23, 0
      %p265 = por %p263, %p264
      %p266 = scmp.le.s32.totalorder 1, %s17
      %p267 = scmp.lt.s32.totalorder %s17, 5
      %p268 = pnand %p266, %p267
      %p269 = pneg %p268
      // Predicated region
      $region9: #{tpu_custom_call.1} parent=5 // pred_check
        _
      $region10: #{tpu_custom_call.1} parent=5 // pred_check_branch
        %271 = sbr.rel (%p268) target = $region12
      $region11: #{tpu_custom_call.1} parent=5 // pred_region
        %s272 = ssub.s32 %s17, 1
        // Predicated region
        $region13: #{tpu_custom_call.1} parent=11 // pred_check
          %p273 = pneg %p146
        $region14: #{tpu_custom_call.1} parent=11 // pred_check_branch
          %275 = sbr.rel (%p273) target = $region16
        $region15: #{tpu_custom_call.1} parent=11 // pred_region
          _
        $region16: #{tpu_custom_call.1} parent=11 // pred_fallthru
          _
        // Predicated region
        $region17: #{tpu_custom_call.1} parent=11 // pred_check
          %p276 = pneg %p167
        $region18: #{tpu_custom_call.1} parent=11 // pred_check_branch
          %278 = sbr.rel (%p276) target = $region20
        $region19: #{tpu_custom_call.1} parent=11 // pred_region
          _
        $region20: #{tpu_custom_call.1} parent=11 // pred_fallthru
          _
        // Predicated region
        $region21: #{tpu_custom_call.1} parent=11 // pred_check
          %p279 = pneg %p188
        $region22: #{tpu_custom_call.1} parent=11 // pred_check_branch
          %281 = sbr.rel (%p279) target = $region24
        $region23: #{tpu_custom_call.1} parent=11 // pred_region
          _
        $region24: #{tpu_custom_call.1} parent=11 // pred_fallthru
          _
        // Predicated region
        $region25: #{tpu_custom_call.1} parent=11 // pred_check
          %p282 = pneg %p209
        $region26: #{tpu_custom_call.1} parent=11 // pred_check_branch
          %284 = sbr.rel (%p282) target = $region28
        $region27: #{tpu_custom_call.1} parent=11 // pred_region
          _
        $region28: #{tpu_custom_call.1} parent=11 // pred_fallthru
          _
        // Predicated region
        $region29: #{tpu_custom_call.1} parent=11 // pred_check
          %p285 = pneg %p230
        $region30: #{tpu_custom_call.1} parent=11 // pred_check_branch
          %287 = sbr.rel (%p285) target = $region32
        $region31: #{tpu_custom_call.1} parent=11 // pred_region
          _
        $region32: #{tpu_custom_call.1} parent=11 // pred_fallthru
          _
      $region12: #{tpu_custom_call.1} parent=5 // pred_fallthru
        _
      %p288 = scmp.lt.s32.totalorder %s17, 4
      // Predicated region
      $region33: #{tpu_custom_call.1} parent=5 // pred_check
        %p289 = pneg %p288
      $region34: #{tpu_custom_call.1} parent=5 // pred_check_branch
        %291 = sbr.rel (%p289) target = $region36
      $region35: #{tpu_custom_call.1} parent=5 // pred_region
        // Predicated region
        $region37: #{tpu_custom_call.1} parent=35 // pred_check
          %p292 = pneg %p57
        $region38: #{tpu_custom_call.1} parent=35 // pred_check_branch
          %294 = sbr.rel (%p292) target = $region40
        $region39: #{tpu_custom_call.1} parent=35 // pred_region
          %s295 = ssub.s32 %s25, 1
          %p296 = scmp.gt.s32.totalorder %s295, 0
          %s297 = scalar_select %p296, %s295, 0
          %p298 = scmp.lt.s32.totalorder %s24, 1
          %s299 = scalar_select %p298, %s24, 1
          %p300 = scmp.lt.s32.totalorder %s297, 1
          %s301 = scalar_select %p300, %s297, 1
          %s302 = smul.addr %s299, 2
          %s303 = sadd.s32 %s301, %s302
          %s304 = smul.addr %s303, 4
          %s305 = scalar_lea.vmem %s0, %s304
          %s306 = ssub.s32 %s25, 1
          %p307 = scmp.gt.s32.totalorder %s306, 0
          %s308 = scalar_select %p307, %s306, 0
        $region40: #{tpu_custom_call.1} parent=35 // pred_fallthru
          _
        // Predicated region
        $region41: #{tpu_custom_call.1} parent=35 // pred_check
          %p309 = pneg %p85
        $region42: #{tpu_custom_call.1} parent=35 // pred_check_branch
          %311 = sbr.rel (%p309) target = $region44
        $region43: #{tpu_custom_call.1} parent=35 // pred_region
          %p312 = scmp.lt.s32.totalorder %s24, 1
          %s313 = scalar_select %p312, %s24, 1
          %p314 = scmp.lt.s32.totalorder %s25, 1
          %s315 = scalar_select %p314, %s25, 1
          %s316 = smul.addr %s313, 2
          %s317 = sadd.s32 %s315, %s316
          %s318 = smul.addr %s317, 4
          %s319 = scalar_lea.vmem %s1, %s318
        $region44: #{tpu_custom_call.1} parent=35 // pred_fallthru
          _
        // Predicated region
        $region45: #{tpu_custom_call.1} parent=35 // pred_check
          %p320 = pneg %p119
        $region46: #{tpu_custom_call.1} parent=35 // pred_check_branch
          %322 = sbr.rel (%p320) target = $region48
        $region47: #{tpu_custom_call.1} parent=35 // pred_region
          %s323 = sadd.s32 %s25, 1
          %p324 = scmp.lt.s32.totalorder %s323, 1
          %s325 = scalar_select %p324, %s323, 1
          %p326 = scmp.lt.s32.totalorder %s24, 1
          %s327 = scalar_select %p326, %s24, 1
          %p328 = scmp.lt.s32.totalorder %s325, 1
          %s329 = scalar_select %p328, %s325, 1
          %s330 = smul.addr %s327, 2
          %s331 = sadd.s32 %s329, %s330
          %s332 = smul.addr %s331, 4
          %s333 = scalar_lea.vmem %s2, %s332
          %s334 = sadd.s32 %s25, 1
          %p335 = scmp.lt.s32.totalorder %s334, 1
          %s336 = scalar_select %p335, %s334, 1
        $region48: #{tpu_custom_call.1} parent=35 // pred_fallthru
          _
      $region36: #{tpu_custom_call.1} parent=5 // pred_fallthru
        _
      %p337 = scmp.le.s32.totalorder 1, %s17
      %p338 = scmp.lt.s32.totalorder %s17, 5
      %p339 = pnand %p337, %p338
      %p340 = pneg %p339
      // Predicated region
      $region49: #{tpu_custom_call.1} parent=5 // pred_check
        _
      $region50: #{tpu_custom_call.1} parent=5 // pred_check_branch
        %342 = sbr.rel (%p339) target = $region52
      $region51: #{tpu_custom_call.1} parent=5 // pred_region
        %s343 = ssub.s32 %s17, 1
        %s344 = ssub.s32 %s27, 1
        %p345 = scmp.gt.s32.totalorder %s344, 0
        %s346 = scalar_select %p345, %s344, 0
        %p347 = scmp.lt.s32.totalorder %s26, 1
        %s348 = scalar_select %p347, %s26, 1
        %p349 = scmp.lt.s32.totalorder %s346, 1
        %s350 = scalar_select %p349, %s346, 1
        %s351 = smul.addr %s348, 2
        %s352 = sadd.s32 %s350, %s351
        %s353 = smul.addr %s352, 4
        %s354 = scalar_lea.vmem %s0, %s353
        %p355 = pneg %p63
        %p356 = pneg %p60
        %p357 = scmp.lt.s32.totalorder %s26, 1
        %s358 = scalar_select %p357, %s26, 1
        %p359 = scmp.lt.s32.totalorder %s27, 1
        %s360 = scalar_select %p359, %s27, 1
        %s361 = smul.addr %s358, 2
        %s362 = sadd.s32 %s360, %s361
        %s363 = smul.addr %s362, 4
        %s364 = scalar_lea.vmem %s1, %s363
        %p365 = pneg %p91
        %p366 = pneg %p88
        %s367 = sadd.s32 %s27, 1
        %p368 = scmp.lt.s32.totalorder %s367, 1
        %s369 = scalar_select %p368, %s367, 1
        %p370 = scmp.lt.s32.totalorder %s26, 1
        %s371 = scalar_select %p370, %s26, 1
        %p372 = scmp.lt.s32.totalorder %s369, 1
        %s373 = scalar_select %p372, %s369, 1
        %s374 = smul.addr %s371, 2
        %s375 = sadd.s32 %s373, %s374
        %s376 = smul.addr %s375, 4
        %s377 = scalar_lea.vmem %s2, %s376
        %p378 = pneg %p125
        %p379 = pneg %p122
        %p380 = pneg %p146
        %p381 = pneg %p143
        %p382 = pneg %p167
        %p383 = pneg %p164
        %p384 = pneg %p188
        %p385 = pneg %p185
        %p386 = pneg %p209
        %p387 = pneg %p206
        %p388 = pneg %p230
        %p389 = pneg %p227
        %p390 = pneg %p258
        %p391 = pneg %p255
        %s392 = sand.u32 %s245, 1
        %s393 = scalar_lea.sflag [#allocation4], %s392
        %s394 = sand.u32 %s245, 1
        %s395 = smul.addr %s394, 32
        %s396 = scalar_lea.vmem [#allocation3], %s395
        %s397 = ssub.s32 %s27, 1
        %p398 = scmp.gt.s32.totalorder %s397, 0
        %s399 = scalar_select %p398, %s397, 0
        %p400 = scmp.lt.s32.totalorder %s26, 1
        %s401 = scalar_select %p400, %s26, 1
        %p402 = scmp.lt.s32.totalorder %s399, 1
        %s403 = scalar_select %p402, %s399, 1
        %s404 = smul.addr %s401, 2
        %s405 = sadd.s32 %s403, %s404
        %s406 = smul.addr %s405, 4
        %s407 = scalar_lea.vmem %s0, %s406
        %s408 = ssub.s32 %s27, 1
        %p409 = scmp.gt.s32.totalorder %s408, 0
        %s410 = scalar_select %p409, %s408, 0
        %p411 = scmp.lt.s32.totalorder %s26, 1
        %s412 = scalar_select %p411, %s26, 1
        %p413 = scmp.lt.s32.totalorder %s27, 1
        %s414 = scalar_select %p413, %s27, 1
        %s415 = smul.addr %s412, 2
        %s416 = sadd.s32 %s414, %s415
        %s417 = smul.addr %s416, 4
        %s418 = scalar_lea.vmem %s1, %s417
        %s419 = sadd.s32 %s27, 1
        %p420 = scmp.lt.s32.totalorder %s419, 1
        %s421 = scalar_select %p420, %s419, 1
        %p422 = scmp.lt.s32.totalorder %s26, 1
        %s423 = scalar_select %p422, %s26, 1
        %p424 = scmp.lt.s32.totalorder %s421, 1
        %s425 = scalar_select %p424, %s421, 1
        %s426 = smul.addr %s423, 2
        %s427 = sadd.s32 %s425, %s426
        %s428 = smul.addr %s427, 4
        %s429 = scalar_lea.vmem %s2, %s428
        %s430 = sadd.s32 %s27, 1
        %p431 = scmp.lt.s32.totalorder %s430, 1
        %s432 = scalar_select %p431, %s430, 1
        %v434 = vld [vmem:[%s3] sm:$0xf]
        %v435 = vld [vmem:[%s3 + $0x4] sm:$0xf]
        %v436 = vld [vmem:[%s3 + $0x8] sm:$0xf]
        %v437 = vld [vmem:[%s3 + $0xc] sm:$0xf]
        %v438 = vld [vmem:[%s4] sm:$0xff]
        %v439 = vld [vmem:[%s4 + $0x8] sm:$0xff]
        %v440 = vld [vmem:[%s4 + $0x10] sm:$0xff]
        %v441 = vld [vmem:[%s4 + $0x18] sm:$0xff]
        %v442 = vld [vmem:[%s418] sm:$0xf]
        %v443 = vpack.c.bf16 %v442, %v442
        %445 = vset.pattern.permute.xlu0 0
        %446 = vperm.xlu0 %445, %v438
        %v447 = vpop.permute.xlu0 %446
        %450 = vset.pattern.permute.xlu0 0
        %451 = vperm.xlu0 %450, %v439
        %v452 = vpop.permute.xlu0 %451
        %455 = vset.pattern.permute.xlu0 0
        %456 = vperm.xlu0 %455, %v440
        %v457 = vpop.permute.xlu0 %456
        %460 = vset.pattern.permute.xlu0 0
        %461 = vperm.xlu0 %460, %v441
        %v462 = vpop.permute.xlu0 %461
        %v468 = vunpack.c.l.b16 %v434
        %v469 = vunpack.c.l.b16 %v435
        %v470 = vunpack.c.l.b16 %v436
        %v471 = vunpack.c.l.b16 %v437
        %v472 = vpack.c.b16 %v469, %v468
        %v473 = vpack.c.b16 %v471, %v470
        %vm474 = vcmask 31744
        %v476 = vsel %vm474, %v472, 0
        %v479 = vsel %vm474, %v473, 0
        %vm481 = vcmask 1041408
        %v483 = vsel %vm481, %v443, 0
        %485 = vmatprep.subr.bf16.mxu0 0
        %486 = vmatpush1.bf16.msra.mxu0 %v483
        %487 = vmatprep.subr.bf16.mxu0 0
        %488 = vmatpush1.bf16.msra.mxu0 0
        %489 = vmatprep.subr.bf16.mxu0 0
        %490 = vmatpush1.bf16.msra.mxu0 0
        %491 = vmatprep.subr.bf16.mxu0 0
        %492 = vmatpush1.bf16.msra.mxu0 0
        %493 = vmatprep.subr.bf16.mxu0 0
        %494 = vmatpush1.bf16.msra.mxu0 0
        %495 = vmatprep.subr.bf16.mxu0 0
        %496 = vmatpush1.bf16.msra.mxu0 0
        %497 = vmatprep.subr.bf16.mxu0 0
        %498 = vmatpush1.bf16.msra.mxu0 0
        %499 = vmatprep.subr.bf16.mxu0 0
        %500 = vmatpush1.bf16.msra.mxu0 0
        %501 = vmatprep.subr.bf16.mxu0 0
        %502 = vmatpush1.bf16.msra.mxu0 0
        %503 = vmatprep.subr.bf16.mxu0 0
        %504 = vmatpush1.bf16.msra.mxu0 0
        %505 = vmatprep.subr.bf16.mxu0 0
        %506 = vmatpush1.bf16.msra.mxu0 0
        %507 = vmatprep.subr.bf16.mxu0 0
        %508 = vmatpush1.bf16.msra.mxu0 0
        %509 = vmatprep.subr.bf16.mxu0 0
        %510 = vmatpush1.bf16.msra.mxu0 0
        %511 = vmatprep.subr.bf16.mxu0 0
        %512 = vmatpush1.bf16.msra.mxu0 0
        %513 = vmatprep.subr.bf16.mxu0 0
        %514 = vmatpush1.bf16.msra.mxu0 0
        %515 = vmatprep.subr.bf16.mxu0 0
        %516 = vmatpush1.bf16.msra.mxu0 0
        %517 = vmatprep.mubr.bf16.mxu0 0
        %518 = vmatmul.mubr.bf16.gmra.mrb[0].mxu0 %v476
        %v519 = vpop.f32.mrb[0].mxu0
        %v520 = vadd.f32 %v447, %v519
        %v521 = vpop.f32.mrb[0].mxu0
        %v522 = vpop.f32.mrb[0].mxu0
        %v523 = vadd.f32 %v452, %v522
        %v524 = vpop.f32.mrb[0].mxu0
        %525 = vmatprep.mubr.bf16.mxu0 0
        %526 = vmatmul.mubr.bf16.gmra.mrb[0].mxu0 %v479
        %v527 = vpop.f32.mrb[0].mxu0
        %v528 = vadd.f32 %v457, %v527
        %v529 = vpop.f32.mrb[0].mxu0
        %v530 = vpop.f32.mrb[0].mxu0
        %v531 = vadd.f32 %v462, %v530
        %v532 = vpop.f32.mrb[0].mxu0
        %533 = vdwg.mxu0
        %534 = vst [vmem:[#allocation2 + $0x8] sm:$0xff] %v520
        %535 = vst [vmem:[#allocation2 + $0x20] sm:$0xff] %v523
        %536 = vst [vmem:[#allocation2 + $0x38] sm:$0xff] %v528
        %537 = vst [vmem:[#allocation2 + $0x50] sm:$0xff] %v531
        %p538 = scmp.eq.s32.totalorder %s27, 0
        // Predicated region
        $region53: #{tpu_custom_call.1} parent=51 // pred_check
          %p539 = pneg %p538
        $region54: #{tpu_custom_call.1} parent=51 // pred_check_branch
          %541 = sbr.rel (%p539) target = $region56
        $region55: #{tpu_custom_call.1} parent=51 // pred_region
          %542 = vst [vmem:[#allocation2] sm:$0xff] 0.0
          %543 = vst [vmem:[#allocation2 + $0x18] sm:$0xff] 0.0
          %544 = vst [vmem:[#allocation2 + $0x30] sm:$0xff] 0.0
          %545 = vst [vmem:[#allocation2 + $0x48] sm:$0xff] 0.0
        $region56: #{tpu_custom_call.1} parent=51 // pred_fallthru
          _
        %p546 = scmp.gt.s32.totalorder %s27, 0
        // Predicated region
        $region57: #{tpu_custom_call.1} parent=51 // pred_check
          %p547 = pneg %p546
        $region58: #{tpu_custom_call.1} parent=51 // pred_check_branch
          %549 = sbr.rel (%p547) target = $region60
        $region59: #{tpu_custom_call.1} parent=51 // pred_region
          %v550 = vld [vmem:[%s407] sm:$0xf]
          %v551 = vpack.c.bf16 %v550, %v550
          %v553 = vsel %vm481, %v551, 0
          %555 = vmatprep.subr.bf16.mxu0 0
          %556 = vmatpush1.bf16.msra.mxu0 %v553
          %557 = vmatprep.subr.bf16.mxu0 0
          %558 = vmatpush1.bf16.msra.mxu0 0
          %559 = vmatprep.subr.bf16.mxu0 0
          %560 = vmatpush1.bf16.msra.mxu0 0
          %561 = vmatprep.subr.bf16.mxu0 0
          %562 = vmatpush1.bf16.msra.mxu0 0
          %563 = vmatprep.subr.bf16.mxu0 0
          %564 = vmatpush1.bf16.msra.mxu0 0
          %565 = vmatprep.subr.bf16.mxu0 0
          %566 = vmatpush1.bf16.msra.mxu0 0
          %567 = vmatprep.subr.bf16.mxu0 0
          %568 = vmatpush1.bf16.msra.mxu0 0
          %569 = vmatprep.subr.bf16.mxu0 0
          %570 = vmatpush1.bf16.msra.mxu0 0
          %571 = vmatprep.subr.bf16.mxu0 0
          %572 = vmatpush1.bf16.msra.mxu0 0
          %573 = vmatprep.subr.bf16.mxu0 0
          %574 = vmatpush1.bf16.msra.mxu0 0
          %575 = vmatprep.subr.bf16.mxu0 0
          %576 = vmatpush1.bf16.msra.mxu0 0
          %577 = vmatprep.subr.bf16.mxu0 0
          %578 = vmatpush1.bf16.msra.mxu0 0
          %579 = vmatprep.subr.bf16.mxu0 0
          %580 = vmatpush1.bf16.msra.mxu0 0
          %581 = vmatprep.subr.bf16.mxu0 0
          %582 = vmatpush1.bf16.msra.mxu0 0
          %583 = vmatprep.subr.bf16.mxu0 0
          %584 = vmatpush1.bf16.msra.mxu0 0
          %585 = vmatprep.subr.bf16.mxu0 0
          %586 = vmatpush1.bf16.msra.mxu0 0
          %587 = vmatprep.mubr.bf16.mxu0 0
          %588 = vmatmul.mubr.bf16.gmra.mrb[0].mxu0 %v476
          %v589 = vpop.f32.mrb[0].mxu0
          %v590 = vadd.f32 %v447, %v589
          %v591 = vpop.f32.mrb[0].mxu0
          %v592 = vpop.f32.mrb[0].mxu0
          %v593 = vadd.f32 %v452, %v592
          %v594 = vpop.f32.mrb[0].mxu0
          %595 = vmatprep.mubr.bf16.mxu0 0
          %596 = vmatmul.mubr.bf16.gmra.mrb[0].mxu0 %v479
          %v597 = vpop.f32.mrb[0].mxu0
          %v598 = vadd.f32 %v457, %v597
          %v599 = vpop.f32.mrb[0].mxu0
          %v600 = vpop.f32.mrb[0].mxu0
          %v601 = vadd.f32 %v462, %v600
          %v602 = vpop.f32.mrb[0].mxu0
          %603 = vdwg.mxu0
          %604 = vst [vmem:[#allocation2] sm:$0xff] %v590
          %605 = vst [vmem:[#allocation2 + $0x18] sm:$0xff] %v593
          %606 = vst [vmem:[#allocation2 + $0x30] sm:$0xff] %v598
          %607 = vst [vmem:[#allocation2 + $0x48] sm:$0xff] %v601
        $region60: #{tpu_custom_call.1} parent=51 // pred_fallthru
          _
        %p608 = scmp.eq.s32.totalorder %s27, 1
        // Predicated region
        $region61: #{tpu_custom_call.1} parent=51 // pred_check
          %p609 = pneg %p608
        $region62: #{tpu_custom_call.1} parent=51 // pred_check_branch
          %611 = sbr.rel (%p609) target = $region64
        $region63: #{tpu_custom_call.1} parent=51 // pred_region
          %612 = vst [vmem:[#allocation2 + $0x10] sm:$0xff] 0.0
          %613 = vst [vmem:[#allocation2 + $0x28] sm:$0xff] 0.0
          %614 = vst [vmem:[#allocation2 + $0x40] sm:$0xff] 0.0
          %615 = vst [vmem:[#allocation2 + $0x58] sm:$0xff] 0.0
        $region64: #{tpu_custom_call.1} parent=51 // pred_fallthru
          _
        %p616 = scmp.lt.s32.totalorder %s27, 1
        // Predicated region
        $region65: #{tpu_custom_call.1} parent=51 // pred_check
          %p617 = pneg %p616
        $region66: #{tpu_custom_call.1} parent=51 // pred_check_branch
          %619 = sbr.rel (%p617) target = $region68
        $region67: #{tpu_custom_call.1} parent=51 // pred_region
          %v620 = vld [vmem:[%s429] sm:$0xf]
          %v621 = vpack.c.bf16 %v620, %v620
          %v623 = vsel %vm481, %v621, 0
          %625 = vmatprep.subr.bf16.mxu0 0
          %626 = vmatpush1.bf16.msra.mxu0 %v623
          %627 = vmatprep.subr.bf16.mxu0 0
          %628 = vmatpush1.bf16.msra.mxu0 0
          %629 = vmatprep.subr.bf16.mxu0 0
          %630 = vmatpush1.bf16.msra.mxu0 0
          %631 = vmatprep.subr.bf16.mxu0 0
          %632 = vmatpush1.bf16.msra.mxu0 0
          %633 = vmatprep.subr.bf16.mxu0 0
          %634 = vmatpush1.bf16.msra.mxu0 0
          %635 = vmatprep.subr.bf16.mxu0 0
          %636 = vmatpush1.bf16.msra.mxu0 0
          %637 = vmatprep.subr.bf16.mxu0 0
          %638 = vmatpush1.bf16.msra.mxu0 0
          %639 = vmatprep.subr.bf16.mxu0 0
          %640 = vmatpush1.bf16.msra.mxu0 0
          %641 = vmatprep.subr.bf16.mxu0 0
          %642 = vmatpush1.bf16.msra.mxu0 0
          %643 = vmatprep.subr.bf16.mxu0 0
          %644 = vmatpush1.bf16.msra.mxu0 0
          %645 = vmatprep.subr.bf16.mxu0 0
          %646 = vmatpush1.bf16.msra.mxu0 0
          %647 = vmatprep.subr.bf16.mxu0 0
          %648 = vmatpush1.bf16.msra.mxu0 0
          %649 = vmatprep.subr.bf16.mxu0 0
          %650 = vmatpush1.bf16.msra.mxu0 0
          %651 = vmatprep.subr.bf16.mxu0 0
          %652 = vmatpush1.bf16.msra.mxu0 0
          %653 = vmatprep.subr.bf16.mxu0 0
          %654 = vmatpush1.bf16.msra.mxu0 0
          %655 = vmatprep.subr.bf16.mxu0 0
          %656 = vmatpush1.bf16.msra.mxu0 0
          %657 = vmatprep.mubr.bf16.mxu0 0
          %658 = vmatmul.mubr.bf16.gmra.mrb[0].mxu0 %v476
          %v659 = vpop.f32.mrb[0].mxu0
          %v660 = vadd.f32 %v447, %v659
          %v661 = vpop.f32.mrb[0].mxu0
          %v662 = vpop.f32.mrb[0].mxu0
          %v663 = vadd.f32 %v452, %v662
          %v664 = vpop.f32.mrb[0].mxu0
          %665 = vmatprep.mubr.bf16.mxu0 0
          %666 = vmatmul.mubr.bf16.gmra.mrb[0].mxu0 %v479
          %v667 = vpop.f32.mrb[0].mxu0
          %v668 = vadd.f32 %v457, %v667
          %v669 = vpop.f32.mrb[0].mxu0
          %v670 = vpop.f32.mrb[0].mxu0
          %v671 = vadd.f32 %v462, %v670
          %v672 = vpop.f32.mrb[0].mxu0
          %673 = vdwg.mxu0
          %674 = vst [vmem:[#allocation2 + $0x10] sm:$0xff] %v660
          %675 = vst [vmem:[#allocation2 + $0x28] sm:$0xff] %v663
          %676 = vst [vmem:[#allocation2 + $0x40] sm:$0xff] %v668
          %677 = vst [vmem:[#allocation2 + $0x58] sm:$0xff] %v671
        $region68: #{tpu_custom_call.1} parent=51 // pred_fallthru
          _
        %v678 = vld [vmem:[%s5] sm:$0xff]
        %v679 = vld [vmem:[%s5 + $0x8] sm:$0xff]
        %v680 = vld [vmem:[%s5 + $0x10] sm:$0xff]
        %v681 = vld [vmem:[%s5 + $0x18] sm:$0xff]
        %v682 = vld [vmem:[%s7] sm:$0x7]
        %v683 = vld [vmem:[#allocation2] sm:$0xff]
        %v684 = vld [vmem:[#allocation2 + $0x8] sm:$0xff]
        %v685 = vld [vmem:[#allocation2 + $0x18] sm:$0xff]
        %v686 = vld [vmem:[#allocation2 + $0x20] sm:$0xff]
        %v687 = vld [vmem:[#allocation2 + $0x30] sm:$0xff]
        %v688 = vld [vmem:[#allocation2 + $0x38] sm:$0xff]
        %v689 = vld [vmem:[#allocation2 + $0x48] sm:$0xff]
        %v690 = vld [vmem:[#allocation2 + $0x50] sm:$0xff]
        %v691 = vlaneseq
        %v692 = vshrl.u32 %v691, 7
        %v693 = vsub.s32 0, %v692
        %v694 = vrot.slane %v682, %v693
        %696 = vrot.lane.b32.xlu0 %v694, 111
        %v697 = vpop.permute.xlu0 %696
        %v699 = vmul.f32 %v683, %v697
        %v700 = vmul.f32 %v684, %v697
        %v701 = vmul.f32 %v685, %v697
        %v702 = vmul.f32 %v686, %v697
        %v703 = vmul.f32 %v687, %v697
        %v704 = vmul.f32 %v688, %v697
        %v705 = vmul.f32 %v689, %v697
        %v706 = vmul.f32 %v690, %v697
        %708 = vset.pattern.permute.xlu0 0
        %709 = vperm.xlu0 %708, %v678
        %v710 = vpop.permute.xlu0 %709
        %713 = vset.pattern.permute.xlu0 0
        %714 = vperm.xlu0 %713, %v679
        %v715 = vpop.permute.xlu0 %714
        %718 = vset.pattern.permute.xlu0 0
        %719 = vperm.xlu0 %718, %v680
        %v720 = vpop.permute.xlu0 %719
        %723 = vset.pattern.permute.xlu0 0
        %724 = vperm.xlu0 %723, %v681
        %v725 = vpop.permute.xlu0 %724
        %v727 = vmul.f32 %v699, %v710
        %v728 = vmul.f32 %v700, %v710
        %v729 = vmul.f32 %v701, %v715
        %v730 = vmul.f32 %v702, %v715
        %v731 = vmul.f32 %v703, %v720
        %v732 = vmul.f32 %v704, %v720
        %v733 = vmul.f32 %v705, %v725
        %v734 = vmul.f32 %v706, %v725
        %735 = vset.pattern.permute.xlu0 1
        %736 = vperm.xlu0 %735, %v678
        %v737 = vpop.permute.xlu0 %736
        %739 = vset.pattern.permute.xlu0 1
        %740 = vperm.xlu0 %739, %v679
        %v741 = vpop.permute.xlu0 %740
        %743 = vset.pattern.permute.xlu0 1
        %744 = vperm.xlu0 %743, %v680
        %v745 = vpop.permute.xlu0 %744
        %747 = vset.pattern.permute.xlu0 1
        %748 = vperm.xlu0 %747, %v681
        %v749 = vpop.permute.xlu0 %748
        %v751 = vmul.f32 %v683, %v737
        %v752 = vmul.f32 %v684, %v737
        %v753 = vmul.f32 %v685, %v741
        %v754 = vmul.f32 %v686, %v741
        %v755 = vmul.f32 %v687, %v745
        %v756 = vmul.f32 %v688, %v745
        %v757 = vmul.f32 %v689, %v749
        %v758 = vmul.f32 %v690, %v749
        %767 = vrot.lane.b32.xlu0 %v751, 127
        %v768 = vpop.permute.xlu0 %767
        %769 = vrot.lane.b32.xlu0 %v752, 127
        %v770 = vpop.permute.xlu0 %769
        %771 = vrot.lane.b32.xlu0 %v753, 127
        %v772 = vpop.permute.xlu0 %771
        %773 = vrot.lane.b32.xlu0 %v754, 127
        %v774 = vpop.permute.xlu0 %773
        %775 = vrot.lane.b32.xlu0 %v755, 127
        %v776 = vpop.permute.xlu0 %775
        %777 = vrot.lane.b32.xlu0 %v756, 127
        %v778 = vpop.permute.xlu0 %777
        %779 = vrot.lane.b32.xlu0 %v757, 127
        %v780 = vpop.permute.xlu0 %779
        %781 = vrot.lane.b32.xlu0 %v758, 127
        %v782 = vpop.permute.xlu0 %781
        %vm783 = vcmask 1039360
        %v784 = vsel %vm783, %v768, %v770
        %v785 = vsel %vm783, %v772, %v774
        %v786 = vsel %vm783, %v776, %v778
        %v787 = vsel %vm783, %v780, %v782
        %v796 = vadd.f32 %v727, %v784
        %v797 = vadd.f32 %v728, %v770
        %v798 = vadd.f32 %v729, %v785
        %v799 = vadd.f32 %v730, %v774
        %v800 = vadd.f32 %v731, %v786
        %v801 = vadd.f32 %v732, %v778
        %v802 = vadd.f32 %v733, %v787
        %v803 = vadd.f32 %v734, %v782
        %v804 = vlaneseq
        %v805 = vshrl.u32 %v804, 7
        %v806 = vsub.s32 2, %v805
        %v807 = vrot.slane %v682, %v806
        %809 = vrot.lane.b32.xlu0 %v807, 113
        %v810 = vpop.permute.xlu0 %809
        %v812 = vmul.f32 %v683, %v810
        %v813 = vmul.f32 %v684, %v810
        %v814 = vmul.f32 %v685, %v810
        %v815 = vmul.f32 %v686, %v810
        %v816 = vmul.f32 %v687, %v810
        %v817 = vmul.f32 %v688, %v810
        %v818 = vmul.f32 %v689, %v810
        %v819 = vmul.f32 %v690, %v810
        %820 = vset.pattern.permute.xlu0 2
        %821 = vperm.xlu0 %820, %v678
        %v822 = vpop.permute.xlu0 %821
        %824 = vset.pattern.permute.xlu0 2
        %825 = vperm.xlu0 %824, %v679
        %v826 = vpop.permute.xlu0 %825
        %828 = vset.pattern.permute.xlu0 2
        %829 = vperm.xlu0 %828, %v680
        %v830 = vpop.permute.xlu0 %829
        %832 = vset.pattern.permute.xlu0 2
        %833 = vperm.xlu0 %832, %v681
        %v834 = vpop.permute.xlu0 %833
        %v836 = vmul.f32 %v812, %v822
        %v837 = vmul.f32 %v813, %v822
        %v838 = vmul.f32 %v814, %v826
        %v839 = vmul.f32 %v815, %v826
        %v840 = vmul.f32 %v816, %v830
        %v841 = vmul.f32 %v817, %v830
        %v842 = vmul.f32 %v818, %v834
        %v843 = vmul.f32 %v819, %v834
        %852 = vrot.lane.b32.xlu0 %v836, 126
        %v853 = vpop.permute.xlu0 %852
        %854 = vrot.lane.b32.xlu0 %v837, 126
        %v855 = vpop.permute.xlu0 %854
        %856 = vrot.lane.b32.xlu0 %v838, 126
        %v857 = vpop.permute.xlu0 %856
        %858 = vrot.lane.b32.xlu0 %v839, 126
        %v859 = vpop.permute.xlu0 %858
        %860 = vrot.lane.b32.xlu0 %v840, 126
        %v861 = vpop.permute.xlu0 %860
        %862 = vrot.lane.b32.xlu0 %v841, 126
        %v863 = vpop.permute.xlu0 %862
        %864 = vrot.lane.b32.xlu0 %v842, 126
        %v865 = vpop.permute.xlu0 %864
        %866 = vrot.lane.b32.xlu0 %v843, 126
        %v867 = vpop.permute.xlu0 %866
        %vm868 = vcmask 1031168
        %v869 = vsel %vm868, %v853, %v855
        %v870 = vsel %vm868, %v857, %v859
        %v871 = vsel %vm868, %v861, %v863
        %v872 = vsel %vm868, %v865, %v867
        %v881 = vadd.f32 %v796, %v869
        %v882 = vadd.f32 %v797, %v855
        %v883 = vadd.f32 %v798, %v870
        %v884 = vadd.f32 %v799, %v859
        %v885 = vadd.f32 %v800, %v871
        %v886 = vadd.f32 %v801, %v863
        %v887 = vadd.f32 %v802, %v872
        %v888 = vadd.f32 %v803, %v867
        %v889 = vld [vmem:[#allocation2] sm:$0xff]
        %v890 = vld [vmem:[#allocation2 + $0x8] sm:$0xff]
        %v891 = vld [vmem:[#allocation2 + $0x10] sm:$0xff]
        %v892 = vld [vmem:[#allocation2 + $0x18] sm:$0xff]
        %v893 = vld [vmem:[#allocation2 + $0x20] sm:$0xff]
        %v894 = vld [vmem:[#allocation2 + $0x28] sm:$0xff]
        %v895 = vld [vmem:[#allocation2 + $0x30] sm:$0xff]
        %v896 = vld [vmem:[#allocation2 + $0x38] sm:$0xff]
        %v897 = vld [vmem:[#allocation2 + $0x40] sm:$0xff]
        %v898 = vld [vmem:[#allocation2 + $0x48] sm:$0xff]
        %v899 = vld [vmem:[#allocation2 + $0x50] sm:$0xff]
        %v900 = vld [vmem:[#allocation2 + $0x58] sm:$0xff]
        %901 = vrot.lane.b32.xlu0 %v694, 127
        %v902 = vpop.permute.xlu0 %901
        %v904 = vmul.f32 %v889, %v902
        %v905 = vmul.f32 %v890, %v902
        %v906 = vmul.f32 %v892, %v902
        %v907 = vmul.f32 %v893, %v902
        %v908 = vmul.f32 %v895, %v902
        %v909 = vmul.f32 %v896, %v902
        %v910 = vmul.f32 %v898, %v902
        %v911 = vmul.f32 %v899, %v902
        %912 = vset.pattern.permute.xlu0 3
        %913 = vperm.xlu0 %912, %v678
        %v914 = vpop.permute.xlu0 %913
        %916 = vset.pattern.permute.xlu0 3
        %917 = vperm.xlu0 %916, %v679
        %v918 = vpop.permute.xlu0 %917
        %920 = vset.pattern.permute.xlu0 3
        %921 = vperm.xlu0 %920, %v680
        %v922 = vpop.permute.xlu0 %921
        %924 = vset.pattern.permute.xlu0 3
        %925 = vperm.xlu0 %924, %v681
        %v926 = vpop.permute.xlu0 %925
        %v928 = vmul.f32 %v904, %v914
        %v929 = vmul.f32 %v905, %v914
        %v930 = vmul.f32 %v906, %v918
        %v931 = vmul.f32 %v907, %v918
        %v932 = vmul.f32 %v908, %v922
        %v933 = vmul.f32 %v909, %v922
        %v934 = vmul.f32 %v910, %v926
        %v935 = vmul.f32 %v911, %v926
        %944 = vrot.lane.b32.xlu0 %v928, 112
        %v945 = vpop.permute.xlu0 %944
        %946 = vrot.lane.b32.xlu0 %v929, 112
        %v947 = vpop.permute.xlu0 %946
        %948 = vrot.lane.b32.xlu0 %v930, 112
        %v949 = vpop.permute.xlu0 %948
        %950 = vrot.lane.b32.xlu0 %v931, 112
        %v951 = vpop.permute.xlu0 %950
        %952 = vrot.lane.b32.xlu0 %v932, 112
        %v953 = vpop.permute.xlu0 %952
        %954 = vrot.lane.b32.xlu0 %v933, 112
        %v955 = vpop.permute.xlu0 %954
        %956 = vrot.lane.b32.xlu0 %v934, 112
        %v957 = vpop.permute.xlu0 %956
        %958 = vrot.lane.b32.xlu0 %v935, 112
        %v959 = vpop.permute.xlu0 %958
        %vm960 = vcmask 916480
        %v961 = vsel %vm960, %v945, %v947
        %v962 = vsel %vm960, %v949, %v951
        %v963 = vsel %vm960, %v953, %v955
        %v964 = vsel %vm960, %v957, %v959
        %v973 = vadd.f32 %v881, %v961
        %v974 = vadd.f32 %v882, %v947
        %v975 = vadd.f32 %v883, %v962
        %v976 = vadd.f32 %v884, %v951
        %v977 = vadd.f32 %v885, %v963
        %v978 = vadd.f32 %v886, %v955
        %v979 = vadd.f32 %v887, %v964
        %v980 = vadd.f32 %v888, %v959
        %981 = vset.pattern.permute.xlu0 4
        %982 = vperm.xlu0 %981, %v678
        %v983 = vpop.permute.xlu0 %982
        %985 = vset.pattern.permute.xlu0 4
        %986 = vperm.xlu0 %985, %v679
        %v987 = vpop.permute.xlu0 %986
        %989 = vset.pattern.permute.xlu0 4
        %990 = vperm.xlu0 %989, %v680
        %v991 = vpop.permute.xlu0 %990
        %993 = vset.pattern.permute.xlu0 4
        %994 = vperm.xlu0 %993, %v681
        %v995 = vpop.permute.xlu0 %994
        %v997 = vmul.f32 %v890, %v983
        %v998 = vmul.f32 %v893, %v987
        %v999 = vmul.f32 %v896, %v991
        %v1000 = vmul.f32 %v899, %v995
        %1005 = vrot.lane.b32.xlu0 %v997, 111
        %v1006 = vpop.permute.xlu0 %1005
        %1007 = vrot.lane.b32.xlu0 %v998, 111
        %v1008 = vpop.permute.xlu0 %1007
        %1009 = vrot.lane.b32.xlu0 %v999, 111
        %v1010 = vpop.permute.xlu0 %1009
        %1011 = vrot.lane.b32.xlu0 %v1000, 111
        %v1012 = vpop.permute.xlu0 %1011
        %v1017 = vadd.f32 %v973, %v1006
        %v1018 = vadd.f32 %v974, %v1006
        %v1019 = vadd.f32 %v975, %v1008
        %v1020 = vadd.f32 %v976, %v1008
        %v1021 = vadd.f32 %v977, %v1010
        %v1022 = vadd.f32 %v978, %v1010
        %v1023 = vadd.f32 %v979, %v1012
        %v1024 = vadd.f32 %v980, %v1012
        %1025 = vrot.lane.b32.xlu0 %v807, 1
        %v1026 = vpop.permute.xlu0 %1025
        %v1028 = vmul.f32 %v890, %v1026
        %v1029 = vmul.f32 %v891, %v1026
        %v1030 = vmul.f32 %v893, %v1026
        %v1031 = vmul.f32 %v894, %v1026
        %v1032 = vmul.f32 %v896, %v1026
        %v1033 = vmul.f32 %v897, %v1026
        %v1034 = vmul.f32 %v899, %v1026
        %v1035 = vmul.f32 %v900, %v1026
        %1036 = vset.pattern.permute.xlu0 5
        %1037 = vperm.xlu0 %1036, %v678
        %v1038 = vpop.permute.xlu0 %1037
        %1040 = vset.pattern.permute.xlu0 5
        %1041 = vperm.xlu0 %1040, %v679
        %v1042 = vpop.permute.xlu0 %1041
        %1044 = vset.pattern.permute.xlu0 5
        %1045 = vperm.xlu0 %1044, %v680
        %v1046 = vpop.permute.xlu0 %1045
        %1048 = vset.pattern.permute.xlu0 5
        %1049 = vperm.xlu0 %1048, %v681
        %v1050 = vpop.permute.xlu0 %1049
        %v1052 = vmul.f32 %v1028, %v1038
        %v1053 = vmul.f32 %v1029, %v1038
        %v1054 = vmul.f32 %v1030, %v1042
        %v1055 = vmul.f32 %v1031, %v1042
        %v1056 = vmul.f32 %v1032, %v1046
        %v1057 = vmul.f32 %v1033, %v1046
        %v1058 = vmul.f32 %v1034, %v1050
        %v1059 = vmul.f32 %v1035, %v1050
        %1068 = vrot.lane.b32.xlu0 %v1052, 110
        %v1069 = vpop.permute.xlu0 %1068
        %1070 = vrot.lane.b32.xlu0 %v1053, 110
        %v1071 = vpop.permute.xlu0 %1070
        %1072 = vrot.lane.b32.xlu0 %v1054, 110
        %v1073 = vpop.permute.xlu0 %1072
        %1074 = vrot.lane.b32.xlu0 %v1055, 110
        %v1075 = vpop.permute.xlu0 %1074
        %1076 = vrot.lane.b32.xlu0 %v1056, 110
        %v1077 = vpop.permute.xlu0 %1076
        %1078 = vrot.lane.b32.xlu0 %v1057, 110
        %v1079 = vpop.permute.xlu0 %1078
        %1080 = vrot.lane.b32.xlu0 %v1058, 110
        %v1081 = vpop.permute.xlu0 %1080
        %1082 = vrot.lane.b32.xlu0 %v1059, 110
        %v1083 = vpop.permute.xlu0 %1082
        %vm1084 = vcmask 900096
        %v1085 = vsel %vm1084, %v1069, %v1071
        %v1086 = vsel %vm1084, %v1073, %v1075
        %v1087 = vsel %vm1084, %v1077, %v1079
        %v1088 = vsel %vm1084, %v1081, %v1083
        %v1097 = vadd.f32 %v1017, %v1069
        %v1098 = vadd.f32 %v1018, %v1085
        %v1099 = vadd.f32 %v1019, %v1073
        %v1100 = vadd.f32 %v1020, %v1086
        %v1101 = vadd.f32 %v1021, %v1077
        %v1102 = vadd.f32 %v1022, %v1087
        %v1103 = vadd.f32 %v1023, %v1081
        %v1104 = vadd.f32 %v1024, %v1088
        %1105 = vrot.lane.b32.xlu0 %v694, 15
        %v1106 = vpop.permute.xlu0 %1105
        %v1108 = vmul.f32 %v890, %v1106
        %v1109 = vmul.f32 %v891, %v1106
        %v1110 = vmul.f32 %v893, %v1106
        %v1111 = vmul.f32 %v894, %v1106
        %v1112 = vmul.f32 %v896, %v1106
        %v1113 = vmul.f32 %v897, %v1106
        %v1114 = vmul.f32 %v899, %v1106
        %v1115 = vmul.f32 %v900, %v1106
        %1116 = vset.pattern.permute.xlu0 6
        %1117 = vperm.xlu0 %1116, %v678
        %v1118 = vpop.permute.xlu0 %1117
        %1120 = vset.pattern.permute.xlu0 6
        %1121 = vperm.xlu0 %1120, %v679
        %v1122 = vpop.permute.xlu0 %1121
        %1124 = vset.pattern.permute.xlu0 6
        %1125 = vperm.xlu0 %1124, %v680
        %v1126 = vpop.permute.xlu0 %1125
        %1128 = vset.pattern.permute.xlu0 6
        %1129 = vperm.xlu0 %1128, %v681
        %v1130 = vpop.permute.xlu0 %1129
        %v1132 = vmul.f32 %v1108, %v1118
        %v1133 = vmul.f32 %v1109, %v1118
        %v1134 = vmul.f32 %v1110, %v1122
        %v1135 = vmul.f32 %v1111, %v1122
        %v1136 = vmul.f32 %v1112, %v1126
        %v1137 = vmul.f32 %v1113, %v1126
        %v1138 = vmul.f32 %v1114, %v1130
        %v1139 = vmul.f32 %v1115, %v1130
        %1148 = vrot.lane.b32.xlu0 %v1132, 96
        %v1149 = vpop.permute.xlu0 %1148
        %1150 = vrot.lane.b32.xlu0 %v1133, 96
        %v1151 = vpop.permute.xlu0 %1150
        %1152 = vrot.lane.b32.xlu0 %v1134, 96
        %v1153 = vpop.permute.xlu0 %1152
        %1154 = vrot.lane.b32.xlu0 %v1135, 96
        %v1155 = vpop.permute.xlu0 %1154
        %1156 = vrot.lane.b32.xlu0 %v1136, 96
        %v1157 = vpop.permute.xlu0 %1156
        %1158 = vrot.lane.b32.xlu0 %v1137, 96
        %v1159 = vpop.permute.xlu0 %1158
        %1160 = vrot.lane.b32.xlu0 %v1138, 96
        %v1161 = vpop.permute.xlu0 %1160
        %1162 = vrot.lane.b32.xlu0 %v1139, 96
        %v1163 = vpop.permute.xlu0 %1162
        %vm1164 = vcmask 785408
        %v1165 = vsel %vm1164, %v1149, %v1151
        %v1166 = vsel %vm1164, %v1153, %v1155
        %v1167 = vsel %vm1164, %v1157, %v1159
        %v1168 = vsel %vm1164, %v1161, %v1163
        %v1177 = vadd.f32 %v1097, %v1149
        %v1178 = vadd.f32 %v1098, %v1165
        %v1179 = vadd.f32 %v1099, %v1153
        %v1180 = vadd.f32 %v1100, %v1166
        %v1181 = vadd.f32 %v1101, %v1157
        %v1182 = vadd.f32 %v1102, %v1167
        %v1183 = vadd.f32 %v1103, %v1161
        %v1184 = vadd.f32 %v1104, %v1168
        %1185 = vset.pattern.permute.xlu0 7
        %1186 = vperm.xlu0 %1185, %v678
        %v1187 = vpop.permute.xlu0 %1186
        %1189 = vset.pattern.permute.xlu0 7
        %1190 = vperm.xlu0 %1189, %v679
        %v1191 = vpop.permute.xlu0 %1190
        %1193 = vset.pattern.permute.xlu0 7
        %1194 = vperm.xlu0 %1193, %v680
        %v1195 = vpop.permute.xlu0 %1194
        %1197 = vset.pattern.permute.xlu0 7
        %1198 = vperm.xlu0 %1197, %v681
        %v1199 = vpop.permute.xlu0 %1198
        %v1201 = vmul.f32 %v890, %v1187
        %v1202 = vmul.f32 %v891, %v1187
        %v1203 = vmul.f32 %v893, %v1191
        %v1204 = vmul.f32 %v894, %v1191
        %v1205 = vmul.f32 %v896, %v1195
        %v1206 = vmul.f32 %v897, %v1195
        %v1207 = vmul.f32 %v899, %v1199
        %v1208 = vmul.f32 %v900, %v1199
        %1217 = vrot.lane.b32.xlu0 %v1201, 95
        %v1218 = vpop.permute.xlu0 %1217
        %1219 = vrot.lane.b32.xlu0 %v1202, 95
        %v1220 = vpop.permute.xlu0 %1219
        %1221 = vrot.lane.b32.xlu0 %v1203, 95
        %v1222 = vpop.permute.xlu0 %1221
        %1223 = vrot.lane.b32.xlu0 %v1204, 95
        %v1224 = vpop.permute.xlu0 %1223
        %1225 = vrot.lane.b32.xlu0 %v1205, 95
        %v1226 = vpop.permute.xlu0 %1225
        %1227 = vrot.lane.b32.xlu0 %v1206, 95
        %v1228 = vpop.permute.xlu0 %1227
        %1229 = vrot.lane.b32.xlu0 %v1207, 95
        %v1230 = vpop.permute.xlu0 %1229
        %1231 = vrot.lane.b32.xlu0 %v1208, 95
        %v1232 = vpop.permute.xlu0 %1231
        %vm1233 = vcmask 777216
        %v1234 = vsel %vm1233, %v1218, %v1220
        %v1235 = vsel %vm1233, %v1222, %v1224
        %v1236 = vsel %vm1233, %v1226, %v1228
        %v1237 = vsel %vm1233, %v1230, %v1232
        %v1246 = vadd.f32 %v1177, %v1218
        %v1247 = vadd.f32 %v1178, %v1234
        %v1248 = vadd.f32 %v1179, %v1222
        %v1249 = vadd.f32 %v1180, %v1235
        %v1250 = vadd.f32 %v1181, %v1226
        %v1251 = vadd.f32 %v1182, %v1236
        %v1252 = vadd.f32 %v1183, %v1230
        %v1253 = vadd.f32 %v1184, %v1237
        %1254 = vrot.lane.b32.xlu0 %v807, 17
        %v1255 = vpop.permute.xlu0 %1254
        %v1257 = vmul.f32 %v890, %v1255
        %v1258 = vmul.f32 %v891, %v1255
        %v1259 = vmul.f32 %v893, %v1255
        %v1260 = vmul.f32 %v894, %v1255
        %v1261 = vmul.f32 %v896, %v1255
        %v1262 = vmul.f32 %v897, %v1255
        %v1263 = vmul.f32 %v899, %v1255
        %v1264 = vmul.f32 %v900, %v1255
        %1265 = vset.pattern.permute.xlu0 8
        %1266 = vperm.xlu0 %1265, %v678
        %v1267 = vpop.permute.xlu0 %1266
        %1269 = vset.pattern.permute.xlu0 8
        %1270 = vperm.xlu0 %1269, %v679
        %v1271 = vpop.permute.xlu0 %1270
        %1273 = vset.pattern.permute.xlu0 8
        %1274 = vperm.xlu0 %1273, %v680
        %v1275 = vpop.permute.xlu0 %1274
        %1277 = vset.pattern.permute.xlu0 8
        %1278 = vperm.xlu0 %1277, %v681
        %v1279 = vpop.permute.xlu0 %1278
        %v1281 = vmul.f32 %v1257, %v1267
        %v1282 = vmul.f32 %v1258, %v1267
        %v1283 = vmul.f32 %v1259, %v1271
        %v1284 = vmul.f32 %v1260, %v1271
        %v1285 = vmul.f32 %v1261, %v1275
        %v1286 = vmul.f32 %v1262, %v1275
        %v1287 = vmul.f32 %v1263, %v1279
        %v1288 = vmul.f32 %v1264, %v1279
        %1297 = vrot.lane.b32.xlu0 %v1281, 94
        %v1298 = vpop.permute.xlu0 %1297
        %1299 = vrot.lane.b32.xlu0 %v1282, 94
        %v1300 = vpop.permute.xlu0 %1299
        %1301 = vrot.lane.b32.xlu0 %v1283, 94
        %v1302 = vpop.permute.xlu0 %1301
        %1303 = vrot.lane.b32.xlu0 %v1284, 94
        %v1304 = vpop.permute.xlu0 %1303
        %1305 = vrot.lane.b32.xlu0 %v1285, 94
        %v1306 = vpop.permute.xlu0 %1305
        %1307 = vrot.lane.b32.xlu0 %v1286, 94
        %v1308 = vpop.permute.xlu0 %1307
        %1309 = vrot.lane.b32.xlu0 %v1287, 94
        %v1310 = vpop.permute.xlu0 %1309
        %1311 = vrot.lane.b32.xlu0 %v1288, 94
        %v1312 = vpop.permute.xlu0 %1311
        %vm1313 = vcmask 769024
        %v1314 = vsel %vm1313, %v1298, %v1300
        %v1315 = vsel %vm1313, %v1302, %v1304
        %v1316 = vsel %vm1313, %v1306, %v1308
        %v1317 = vsel %vm1313, %v1310, %v1312
        %v1326 = vadd.f32 %v1246, %v1298
        %v1327 = vadd.f32 %v1247, %v1314
        %v1328 = vadd.f32 %v1248, %v1302
        %v1329 = vadd.f32 %v1249, %v1315
        %v1330 = vadd.f32 %v1250, %v1306
        %v1331 = vadd.f32 %v1251, %v1316
        %v1332 = vadd.f32 %v1252, %v1310
        %v1333 = vadd.f32 %v1253, %v1317
        %v1334 = vld [vmem:[%s6] sm:$0xff]
        %v1335 = vld [vmem:[%s6 + $0x8] sm:$0xff]
        %v1336 = vld [vmem:[%s6 + $0x10] sm:$0xff]
        %v1337 = vld [vmem:[%s6 + $0x18] sm:$0xff]
        %1339 = vset.pattern.permute.xlu0 0
        %1340 = vperm.xlu0 %1339, %v1334
        %v1341 = vpop.permute.xlu0 %1340
        %1344 = vset.pattern.permute.xlu0 0
        %1345 = vperm.xlu0 %1344, %v1335
        %v1346 = vpop.permute.xlu0 %1345
        %1349 = vset.pattern.permute.xlu0 0
        %1350 = vperm.xlu0 %1349, %v1336
        %v1351 = vpop.permute.xlu0 %1350
        %1354 = vset.pattern.permute.xlu0 0
        %1355 = vperm.xlu0 %1354, %v1337
        %v1356 = vpop.permute.xlu0 %1355
        %v1358 = vadd.f32 %v1326, %v1341
        %v1359 = vadd.f32 %v1327, %v1341
        %v1360 = vadd.f32 %v1328, %v1346
        %v1361 = vadd.f32 %v1329, %v1346
        %v1362 = vadd.f32 %v1330, %v1351
        %v1363 = vadd.f32 %v1331, %v1351
        %v1364 = vadd.f32 %v1332, %v1356
        %v1365 = vadd.f32 %v1333, %v1356
        %v1366 = vmax.f32 %v1358, 0.0
        %v1367 = vmax.f32 %v1359, 0.0
        %v1368 = vmax.f32 %v1360, 0.0
        %v1369 = vmax.f32 %v1361, 0.0
        %v1370 = vmax.f32 %v1362, 0.0
        %v1371 = vmax.f32 %v1363, 0.0
        %v1372 = vmax.f32 %v1364, 0.0
        %v1373 = vmax.f32 %v1365, 0.0
        %1382 = vrot.lane.b32.xlu0 %v1366, 17
        %v1383 = vpop.permute.xlu0 %1382
        %1384 = vrot.lane.b32.xlu0 %v1367, 17
        %v1385 = vpop.permute.xlu0 %1384
        %1386 = vrot.lane.b32.xlu0 %v1368, 17
        %v1387 = vpop.permute.xlu0 %1386
        %1388 = vrot.lane.b32.xlu0 %v1369, 17
        %v1389 = vpop.permute.xlu0 %1388
        %1390 = vrot.lane.b32.xlu0 %v1370, 17
        %v1391 = vpop.permute.xlu0 %1390
        %1392 = vrot.lane.b32.xlu0 %v1371, 17
        %v1393 = vpop.permute.xlu0 %1392
        %1394 = vrot.lane.b32.xlu0 %v1372, 17
        %v1395 = vpop.permute.xlu0 %1394
        %1396 = vrot.lane.b32.xlu0 %v1373, 17
        %v1397 = vpop.permute.xlu0 %1396
        %vm1398 = vcmask 138240
        %v1399 = vsel %vm1398, %v1383, %v1385
        %v1400 = vsel %vm1398, %v1387, %v1389
        %v1401 = vsel %vm1398, %v1391, %v1393
        %v1402 = vsel %vm1398, %v1395, %v1397
        %1407 = vst [vmem:[%s396] sm:$0xff] %v1399
        %1408 = vst [vmem:[%s396 + $0x8] sm:$0xff] %v1400
        %1409 = vst [vmem:[%s396 + $0x10] sm:$0xff] %v1401
        %1410 = vst [vmem:[%s396 + $0x18] sm:$0xff] %v1402
        %s1411 = sand.u32 %s245, 1
        %s1412 = scalar_lea.sflag [#allocation4], %s1411
        %s1413 = sand.u32 %s245, 1
        %s1414 = smul.addr %s1413, 32
        %s1415 = scalar_lea.vmem [#allocation3], %s1414
        // Predicated region
        $region69: #{tpu_custom_call.1} parent=51 // pred_check
          %p1416 = pneg %p255
        $region70: #{tpu_custom_call.1} parent=51 // pred_check_branch
          %1418 = sbr.rel (%p1416) target = $region72
        $region71: #{tpu_custom_call.1} parent=51 // pred_region
          %s1420 = ssub.s32 512, 512
          %1421 = vsyncadd %s1412, %s1420
          %s1422 = smul.addr %s26, 8
          %s1423 = sadd.s32 %s27, %s1422
          %s1424 = smul.addr %s1423, 128
          %s1425 = scalar_lea.hbm %s8, %s1424
          %s1426 = sshll.u32 %s1415, 4
          %s1427 = int_to_ptr.vmem [resolvable:$true] %s1426
          %1432 = dma.vmem_to_hbm [thread:$0]  %s1427, 512, %s1425, %s1412, 128, 256, 8
        $region72: #{tpu_custom_call.1} parent=51 // pred_fallthru
          _
      $region52: #{tpu_custom_call.1} parent=5 // pred_fallthru
        _
      %p1433 = scmp.le.s32.totalorder 2, %s17
      // Predicated region
      $region73: #{tpu_custom_call.1} parent=5 // pred_check
        %p1434 = pneg %p1433
      $region74: #{tpu_custom_call.1} parent=5 // pred_check_branch
        %1436 = sbr.rel (%p1434) target = $region76
      $region75: #{tpu_custom_call.1} parent=5 // pred_region
        %s1437 = ssub.s32 %s17, 2
        // Predicated region
        $region77: #{tpu_custom_call.1} parent=75 // pred_check
          %p1438 = pneg %p261
        $region78: #{tpu_custom_call.1} parent=75 // pred_check_branch
          %1440 = sbr.rel (%p1438) target = $region80
        $region79: #{tpu_custom_call.1} parent=75 // pred_region
          %s1441 = sand.u32 %s246, 1
          %s1442 = scalar_lea.sflag [#allocation4], %s1441
          %s1443 = sand.u32 %s246, 1
          %s1444 = smul.addr %s1443, 32
          %s1445 = scalar_lea.vmem [#allocation3], %s1444
          %1446 = dma.done %s1442, 512
        $region80: #{tpu_custom_call.1} parent=75 // pred_fallthru
          _
      $region76: #{tpu_custom_call.1} parent=5 // pred_fallthru
        _
    $region6: #{tpu_custom_call.1} parent=1 // loop_footer
      %s21 = sadd.s32 1, %s17
    $region7: #{tpu_custom_call.1} parent=1 // loop_footer_branch
      %16 = sbr.rel target = $region3
    $region8: #{tpu_custom_call.1} parent=1 // loop_exit
      _
    %1447 = vsyncpa [#allocation4], 1
    %s1448 = scalar_lea.sflag [#allocation4], 1
    %1449 = vsyncpa %s1448, 1

</llo_original>
